<compile_context>
chip_gen: v7x
topology: tpu7x:2x2x1
jax: 0.10.0
libtpu: 0.0.40
codegen_flags: <defaults>
</compile_context>

<pallas_src>
import math

import jax
import jax.numpy as jnp
from jax.experimental import pallas as pl
from jax.experimental.pallas import tpu as pltpu

SUBLANE = 8    # f32 sublane multiple
LANE = 128     # lane width


def critic_rnn_kernel(
    s_ref,      # (T*Bp, Dp)   time-major flattened, zero-padded input states
    w1_ref,     # (Dp, Hp)     fc1 weight (pre-transposed, padded)
    b1_ref,     # (1, Hp)      fc1 bias
    wih_ref,    # (Hp, 3*Hp)   GRU W_ih, gates r|z|n each in their own 128-lane block
    bi_ref,     # (1, 3*Hp)    folded input-side gate biases (r,z: b_ih+b_hh; n: b_ih)
    whh_ref,    # (Hp, 3*Hp)   GRU W_hh, same fused layout
    bhn_ref,    # (1, Hp)      b_hh for the n gate (must stay on the recurrent path)
    w2_ref,     # (1, Hp)      fc2 weight row
    b2_ref,     # (1, 1)       fc2 bias
    v_ref,      # out (T, Bp)  per-timestep values (padded batch)
):
    T, Bp = v_ref.shape
    Hp = w1_ref.shape[1]

    # ---------------- one-shot batched pre-pass (off the serial path) ----------------
    # fc1 + tanh for all T*Bp rows at once, then ONE fused input-side gate GEMM.
    a = jnp.tanh(
        jnp.dot(s_ref[...], w1_ref[...], preferred_element_type=jnp.float32)
        + b1_ref[...]
    )                                                                   # (T*Bp, Hp)
    gi = jnp.dot(a, wih_ref[...], preferred_element_type=jnp.float32) + bi_ref[...]
    # gi: (T*Bp, 3*Hp), kept value-resident (no scratch round-trip).

    # Hoist loop-invariant weight loads out of the serial loop.
    whh = whh_ref[...]          # (Hp, 3*Hp)
    bh_n = bhn_ref[...]         # (1, Hp)
    w2 = w2_ref[...]            # (1, Hp)
    b2 = b2_ref[...]            # (1, 1)

    # ---------------- the only truly sequential work: the GRU cell over time ---------
    # T is small & static -> Python-unrolled loop, every index/slice is static and
    # sublane/lane-tile aligned (Bp multiple of 8, Hp multiple of 128).
    h = jnp.zeros((Bp, Hp), jnp.float32)    # critic_rnn_hidden is None -> h_0 = 0
    for t in range(T):
        gi_t = gi[t * Bp:(t + 1) * Bp, :]                               # (Bp, 3*Hp)
        # ONE fused recurrent matmul per step instead of three.
        gh = jnp.dot(h, whh, preferred_element_type=jnp.float32)        # (Bp, 3*Hp)

        r = jax.nn.sigmoid(gi_t[:, 0:Hp] + gh[:, 0:Hp])
        z = jax.nn.sigmoid(gi_t[:, Hp:2 * Hp] + gh[:, Hp:2 * Hp])
        n = jnp.tanh(gi_t[:, 2 * Hp:3 * Hp] + r * (gh[:, 2 * Hp:3 * Hp] + bh_n))
        h = (1.0 - z) * n + z * h

        # fc2 folded into the loop: doesn't feed h_{t+1}, hides under the recurrence.
        v_ref[t] = jnp.sum(h * w2, axis=-1) + b2[0]


def _pad2(x, rows, cols):
    return jnp.pad(x, ((0, rows - x.shape[0]), (0, cols - x.shape[1])))


def prepare_kernel_params(p, d_pad, h_pad):
    """Split per gate, pre-transpose, zero-pad to (sublane, lane) multiples, fuse gates."""
    H, _ = p["fc1_w"].shape
    wih, whh = p["gru_wih"], p["gru_whh"]
    bih, bhh = p["gru_bih"], p["gru_bhh"]

    def gate_w(w, g):      # g: 0=r, 1=z, 2=n -> (h_pad, h_pad), pre-transposed for x @ W
        return _pad2(w[g * H:(g + 1) * H].T, h_pad, h_pad)

    def pad_row(b):        # 1-D bias -> (1, h_pad)
        return jnp.pad(b[None, :], ((0, 0), (0, h_pad - b.shape[0])))

    # Fused gate weights: each gate gets its own lane-aligned 128-wide block.
    wih_cat = jnp.concatenate([gate_w(wih, 0), gate_w(wih, 1), gate_w(wih, 2)], axis=1)
    whh_cat = jnp.concatenate([gate_w(whh, 0), gate_w(whh, 1), gate_w(whh, 2)], axis=1)
    # r/z gates: sigmoid(x W_ih + b_ih + h W_hh + b_hh) -> fold both biases up front.
    # n gate:   tanh(x W_in + b_in + r * (h W_hn + b_hn)) -> b_hn stays recurrent.
    bi_cat = jnp.concatenate([
        pad_row(bih[0:H] + bhh[0:H]),
        pad_row(bih[H:2 * H] + bhh[H:2 * H]),
        pad_row(bih[2 * H:3 * H]),
    ], axis=1)

    return dict(
        w1=_pad2(p["fc1_w"].T, d_pad, h_pad),          # (Dp, Hp)
        b1=pad_row(p["fc1_b"]),                         # (1, Hp)
        wih_cat=wih_cat,                                # (Hp, 3*Hp)
        bi_cat=bi_cat,                                  # (1, 3*Hp)
        whh_cat=whh_cat,                                # (Hp, 3*Hp)
        bh_n=pad_row(bhh[2 * H:3 * H]),                 # (1, Hp)
        w2=_pad2(p["fc2_w"], 1, h_pad),                 # (1, Hp)
        b2=p["fc2_b"][None, :],                         # (1, 1)
    )


@jax.jit
def critic_rnn_forward(s, params):
    """s: (B, T, state_dim) float32 -> value: (B, T, 1) float32 (matches Critic_RNN.forward)."""
    B, T, D = s.shape
    H = params["fc1_w"].shape[0]

    b_pad = max(SUBLANE, pl.cdiv(B, SUBLANE) * SUBLANE)
    d_pad = pl.cdiv(D, LANE) * LANE
    h_pad = pl.cdiv(H, LANE) * LANE

    kp = prepare_kernel_params(params, d_pad, h_pad)

    # Time-major flatten + zero-pad batch/feature dims so every in-kernel slice is
    # sublane/lane aligned.  One tiny one-shot relayout, not a per-step cost.
    s_tm = jnp.transpose(s, (1, 0, 2))                                   # (T, B, D)
    s_tm = jnp.pad(s_tm, ((0, 0), (0, b_pad - B), (0, d_pad - D)))       # (T, Bp, Dp)
    s_flat = s_tm.reshape(T * b_pad, d_pad)

    args = (
        s_flat, kp["w1"], kp["b1"],
        kp["wih_cat"], kp["bi_cat"],
        kp["whh_cat"], kp["bh_n"],
        kp["w2"], kp["b2"],
    )
    vmem = pl.BlockSpec(memory_space=pltpu.MemorySpace.VMEM)

    v_tb = pl.pallas_call(
        critic_rnn_kernel,
        out_shape=jax.ShapeDtypeStruct((T, b_pad), jnp.float32),
        in_specs=[vmem] * len(args),
        out_specs=vmem,
    )(*args)

    # Drop batch padding, back to batch-first (B, T, 1) like PyTorch.
    return jnp.transpose(v_tb[:, :B])[:, :, None]


def make_params(key, state_dim, hidden_dim):
    """PyTorch-layout Critic_RNN parameters (use_gru=True).

    Weights: orthogonal, gain sqrt(2) (as orthogonal_init).  Biases: small random values
    so the correctness check exercises every bias term (forward math is init-agnostic).
    """
    gain = math.sqrt(2.0)
    ortho = jax.nn.initializers.orthogonal(scale=gain)
    ks = jax.random.split(key, 8)
    H, D = hidden_dim, state_dim
    return dict(
        fc1_w=ortho(ks[0], (H, D), jnp.float32),           # fc1.weight
        fc1_b=0.1 * jax.random.normal(ks[1], (H,), jnp.float32),
        gru_wih=ortho(ks[2], (3 * H, H), jnp.float32),     # gru.weight_ih_l0 (r|z|n)
        gru_whh=ortho(ks[3], (3 * H, H), jnp.float32),     # gru.weight_hh_l0
        gru_bih=0.1 * jax.random.normal(ks[4], (3 * H,), jnp.float32),
        gru_bhh=0.1 * jax.random.normal(ks[5], (3 * H,), jnp.float32),
        fc2_w=ortho(ks[6], (1, H), jnp.float32),           # fc2.weight
        fc2_b=0.1 * jax.random.normal(ks[7], (1,), jnp.float32),
    )


def reference_forward(s, p):
    """Pure-JAX reference of the PyTorch forward (PyTorch param layout, gate order r,z,n)."""
    H = p["fc1_w"].shape[0]
    a = jnp.tanh(s @ p["fc1_w"].T + p["fc1_b"])            # (B, T, H)
    wih, whh = p["gru_wih"], p["gru_whh"]
    bih, bhh = p["gru_bih"], p["gru_bhh"]

    def step(h, x_t):
        gi = x_t @ wih.T + bih
        gh = h @ whh.T + bhh
        i_r, i_z, i_n = gi[:, :H], gi[:, H:2 * H], gi[:, 2 * H:]
        h_r, h_z, h_n = gh[:, :H], gh[:, H:2 * H], gh[:, 2 * H:]
        r = jax.nn.sigmoid(i_r + h_r)
        z = jax.nn.sigmoid(i_z + h_z)
        n = jnp.tanh(i_n + r * h_n)
        h_new = (1.0 - z) * n + z * h
        return h_new, h_new

    h0 = jnp.zeros((s.shape[0], H), jnp.float32)
    _, hs = jax.lax.scan(step, h0, jnp.transpose(a, (1, 0, 2)))   # (T, B, H)
    out = jnp.transpose(hs, (1, 0, 2))                            # (B, T, H)
    return out @ p["fc2_w"].T + p["fc2_b"]                        # (B, T, 1)


if __name__ == "__main__":
    B, T, STATE_DIM, HIDDEN = 2, 8, 8, 32

    key = jax.random.PRNGKey(0)
    k_param, k_s = jax.random.split(key)

    params = make_params(k_param, STATE_DIM, HIDDEN)
    s = jax.random.normal(k_s, (B, T, STATE_DIM), jnp.float32)

    value = critic_rnn_forward(s, params)
    jax.block_until_ready(value)

    value_ref = reference_forward(s, params)
    assert value.shape == (B, T, 1)
    assert jnp.allclose(value, value_ref, atol=1e-4, rtol=1e-4), (
        "Pallas kernel output mismatch vs JAX reference"
    )

    print("KERNEL_OK")
</pallas_src>

<mosaic_0001>
module attributes {stable_mosaic.version = 11 : i64} {
  func.func @critic_rnn_kernel(%arg0: memref<64x128xf32, #tpu.memory_space<vmem>>, %arg1: memref<128x128xf32, #tpu.memory_space<vmem>>, %arg2: memref<1x128xf32, #tpu.memory_space<vmem>>, %arg3: memref<128x384xf32, #tpu.memory_space<vmem>>, %arg4: memref<1x384xf32, #tpu.memory_space<vmem>>, %arg5: memref<128x384xf32, #tpu.memory_space<vmem>>, %arg6: memref<1x128xf32, #tpu.memory_space<vmem>>, %arg7: memref<1x128xf32, #tpu.memory_space<vmem>>, %arg8: memref<1x1xf32, #tpu.memory_space<vmem>>, %arg9: memref<8x8xf32, #tpu.memory_space<vmem>>) attributes {dimension_semantics = [], scalar_prefetch = 0 : i64, scratch_operands = 0 : i64, tpu.core_type = #tpu.core_type<tc>} {
    %c0 = arith.constant 0 : index
    %c0_0 = arith.constant 0 : index
    %0 = vector.load %arg0[%c0, %c0_0] : memref<64x128xf32, #tpu.memory_space<vmem>>, vector<64x128xf32>
    %c0_1 = arith.constant 0 : index
    %c0_2 = arith.constant 0 : index
    %1 = vector.load %arg1[%c0_1, %c0_2] : memref<128x128xf32, #tpu.memory_space<vmem>>, vector<128x128xf32>
    %cst = arith.constant dense<0.000000e+00> : vector<64x128xf32>
    %2 = tpu.matmul %0, %1, %cst {dimension_numbers = #tpu.dot_dimension_numbers<[1], [0], [0], [1], [0, 0, 1, 1], [], []>} : vector<64x128xf32>, vector<128x128xf32>, vector<64x128xf32> -> vector<64x128xf32>
    %c0_3 = arith.constant 0 : index
    %c0_4 = arith.constant 0 : index
    %3 = vector.load %arg2[%c0_3, %c0_4] : memref<1x128xf32, #tpu.memory_space<vmem>>, vector<1x128xf32>
    %4 = vector.broadcast %3 : vector<1x128xf32> to vector<64x128xf32>
    %5 = arith.addf %2, %4 : vector<64x128xf32>
    %6 = math.tanh %5 : vector<64x128xf32>
    %c0_5 = arith.constant 0 : index
    %c0_6 = arith.constant 0 : index
    %7 = vector.load %arg3[%c0_5, %c0_6] : memref<128x384xf32, #tpu.memory_space<vmem>>, vector<128x384xf32>
    %cst_7 = arith.constant dense<0.000000e+00> : vector<64x384xf32>
    %8 = tpu.matmul %6, %7, %cst_7 {dimension_numbers = #tpu.dot_dimension_numbers<[1], [0], [0], [1], [0, 0, 1, 1], [], []>} : vector<64x128xf32>, vector<128x384xf32>, vector<64x384xf32> -> vector<64x384xf32>
    %c0_8 = arith.constant 0 : index
    %c0_9 = arith.constant 0 : index
    %9 = vector.load %arg4[%c0_8, %c0_9] : memref<1x384xf32, #tpu.memory_space<vmem>>, vector<1x384xf32>
    %10 = vector.broadcast %9 : vector<1x384xf32> to vector<64x384xf32>
    %11 = arith.addf %8, %10 : vector<64x384xf32>
    %c0_10 = arith.constant 0 : index
    %c0_11 = arith.constant 0 : index
    %12 = vector.load %arg5[%c0_10, %c0_11] : memref<128x384xf32, #tpu.memory_space<vmem>>, vector<128x384xf32>
    %c0_12 = arith.constant 0 : index
    %c0_13 = arith.constant 0 : index
    %13 = vector.load %arg6[%c0_12, %c0_13] : memref<1x128xf32, #tpu.memory_space<vmem>>, vector<1x128xf32>
    %c0_14 = arith.constant 0 : index
    %c0_15 = arith.constant 0 : index
    %14 = vector.load %arg7[%c0_14, %c0_15] : memref<1x128xf32, #tpu.memory_space<vmem>>, vector<1x128xf32>
    %c0_16 = arith.constant 0 : index
    %c0_17 = arith.constant 0 : index
    %15 = vector.load %arg8[%c0_16, %c0_17] : memref<1x1xf32, #tpu.memory_space<vmem>>, vector<1x1xf32>
    %cst_18 = arith.constant 0.000000e+00 : f32
    %16 = vector.broadcast %cst_18 : f32 to vector<8x128xf32>
    %17 = vector.extract_strided_slice %11 {offsets = [0, 0], sizes = [8, 384], strides = [1, 1]} : vector<64x384xf32> to vector<8x384xf32>
    %cst_19 = arith.constant dense<0.000000e+00> : vector<8x384xf32>
    %18 = tpu.matmul %16, %12, %cst_19 {dimension_numbers = #tpu.dot_dimension_numbers<[1], [0], [0], [1], [0, 0, 1, 1], [], []>} : vector<8x128xf32>, vector<128x384xf32>, vector<8x384xf32> -> vector<8x384xf32>
    %19 = vector.extract_strided_slice %17 {offsets = [0, 0], sizes = [8, 128], strides = [1, 1]} : vector<8x384xf32> to vector<8x128xf32>
    %20 = vector.extract_strided_slice %18 {offsets = [0, 0], sizes = [8, 128], strides = [1, 1]} : vector<8x384xf32> to vector<8x128xf32>
    %21 = arith.addf %19, %20 : vector<8x128xf32>
    %22 = arith.negf %21 : vector<8x128xf32>
    %23 = math.exp %22 : vector<8x128xf32>
    %cst_20 = arith.constant 1.000000e+00 : f32
    %24 = vector.broadcast %cst_20 : f32 to vector<8x128xf32>
    %25 = arith.addf %24, %23 : vector<8x128xf32>
    %26 = arith.divf %24, %25 : vector<8x128xf32>
    %27 = vector.extract_strided_slice %17 {offsets = [0, 128], sizes = [8, 128], strides = [1, 1]} : vector<8x384xf32> to vector<8x128xf32>
    %28 = vector.extract_strided_slice %18 {offsets = [0, 128], sizes = [8, 128], strides = [1, 1]} : vector<8x384xf32> to vector<8x128xf32>
    %29 = arith.addf %27, %28 : vector<8x128xf32>
    %30 = arith.negf %29 : vector<8x128xf32>
    %31 = math.exp %30 : vector<8x128xf32>
    %cst_21 = arith.constant 1.000000e+00 : f32
    %32 = vector.broadcast %cst_21 : f32 to vector<8x128xf32>
    %33 = arith.addf %32, %31 : vector<8x128xf32>
    %34 = arith.divf %32, %33 : vector<8x128xf32>
    %35 = vector.extract_strided_slice %17 {offsets = [0, 256], sizes = [8, 128], strides = [1, 1]} : vector<8x384xf32> to vector<8x128xf32>
    %36 = vector.extract_strided_slice %18 {offsets = [0, 256], sizes = [8, 128], strides = [1, 1]} : vector<8x384xf32> to vector<8x128xf32>
    %37 = vector.broadcast %13 : vector<1x128xf32> to vector<8x128xf32>
    %38 = arith.addf %36, %37 : vector<8x128xf32>
    %39 = arith.mulf %26, %38 : vector<8x128xf32>
    %40 = arith.addf %35, %39 : vector<8x128xf32>
    %41 = math.tanh %40 : vector<8x128xf32>
    %cst_22 = arith.constant 1.000000e+00 : f32
    %42 = vector.broadcast %cst_22 : f32 to vector<8x128xf32>
    %43 = arith.subf %42, %34 : vector<8x128xf32>
    %44 = arith.mulf %43, %41 : vector<8x128xf32>
    %45 = arith.mulf %34, %16 : vector<8x128xf32>
    %46 = arith.addf %44, %45 : vector<8x128xf32>
    %47 = vector.broadcast %14 : vector<1x128xf32> to vector<8x128xf32>
    %48 = arith.mulf %46, %47 : vector<8x128xf32>
    %cst_23 = arith.constant dense<0.000000e+00> : vector<8xf32>
    %49 = vector.multi_reduction <add>, %48, %cst_23 [1] : vector<8x128xf32> to vector<8xf32>
    %50 = vector.shape_cast %15 : vector<1x1xf32> to vector<1xf32>
    %51 = vector.broadcast %50 : vector<1xf32> to vector<8xf32>
    %52 = arith.addf %49, %51 : vector<8xf32>
    %c0_24 = arith.constant 0 : index
    %c0_25 = arith.constant 0 : index
    %53 = vector.load %arg9[%c0_24, %c0_25] : memref<8x8xf32, #tpu.memory_space<vmem>>, vector<1x8xf32>
    %54 = vector.shape_cast %53 : vector<1x8xf32> to vector<8xf32>
    %55 = vector.shape_cast %52 : vector<8xf32> to vector<1x8xf32>
    tpu.vector_store %arg9[%c0_24, %c0_25], %55 {strides = array<i32>} : memref<8x8xf32, #tpu.memory_space<vmem>>, vector<1x8xf32>,
    %56 = vector.extract_strided_slice %11 {offsets = [8, 0], sizes = [8, 384], strides = [1, 1]} : vector<64x384xf32> to vector<8x384xf32>
    %cst_26 = arith.constant dense<0.000000e+00> : vector<8x384xf32>
    %57 = tpu.matmul %46, %12, %cst_26 {dimension_numbers = #tpu.dot_dimension_numbers<[1], [0], [0], [1], [0, 0, 1, 1], [], []>} : vector<8x128xf32>, vector<128x384xf32>, vector<8x384xf32> -> vector<8x384xf32>
    %58 = vector.extract_strided_slice %56 {offsets = [0, 0], sizes = [8, 128], strides = [1, 1]} : vector<8x384xf32> to vector<8x128xf32>
    %59 = vector.extract_strided_slice %57 {offsets = [0, 0], sizes = [8, 128], strides = [1, 1]} : vector<8x384xf32> to vector<8x128xf32>
    %60 = arith.addf %58, %59 : vector<8x128xf32>
    %61 = arith.negf %60 : vector<8x128xf32>
    %62 = math.exp %61 : vector<8x128xf32>
    %cst_27 = arith.constant 1.000000e+00 : f32
    %63 = vector.broadcast %cst_27 : f32 to vector<8x128xf32>
    %64 = arith.addf %63, %62 : vector<8x128xf32>
    %65 = arith.divf %63, %64 : vector<8x128xf32>
    %66 = vector.extract_strided_slice %56 {offsets = [0, 128], sizes = [8, 128], strides = [1, 1]} : vector<8x384xf32> to vector<8x128xf32>
    %67 = vector.extract_strided_slice %57 {offsets = [0, 128], sizes = [8, 128], strides = [1, 1]} : vector<8x384xf32> to vector<8x128xf32>
    %68 = arith.addf %66, %67 : vector<8x128xf32>
    %69 = arith.negf %68 : vector<8x128xf32>
    %70 = math.exp %69 : vector<8x128xf32>
    %cst_28 = arith.constant 1.000000e+00 : f32
    %71 = vector.broadcast %cst_28 : f32 to vector<8x128xf32>
    %72 = arith.addf %71, %70 : vector<8x128xf32>
    %73 = arith.divf %71, %72 : vector<8x128xf32>
    %74 = vector.extract_strided_slice %56 {offsets = [0, 256], sizes = [8, 128], strides = [1, 1]} : vector<8x384xf32> to vector<8x128xf32>
    %75 = vector.extract_strided_slice %57 {offsets = [0, 256], sizes = [8, 128], strides = [1, 1]} : vector<8x384xf32> to vector<8x128xf32>
    %76 = vector.broadcast %13 : vector<1x128xf32> to vector<8x128xf32>
    %77 = arith.addf %75, %76 : vector<8x128xf32>
    %78 = arith.mulf %65, %77 : vector<8x128xf32>
    %79 = arith.addf %74, %78 : vector<8x128xf32>
    %80 = math.tanh %79 : vector<8x128xf32>
    %cst_29 = arith.constant 1.000000e+00 : f32
    %81 = vector.broadcast %cst_29 : f32 to vector<8x128xf32>
    %82 = arith.subf %81, %73 : vector<8x128xf32>
    %83 = arith.mulf %82, %80 : vector<8x128xf32>
    %84 = arith.mulf %73, %46 : vector<8x128xf32>
    %85 = arith.addf %83, %84 : vector<8x128xf32>
    %86 = vector.broadcast %14 : vector<1x128xf32> to vector<8x128xf32>
    %87 = arith.mulf %85, %86 : vector<8x128xf32>
    %cst_30 = arith.constant dense<0.000000e+00> : vector<8xf32>
    %88 = vector.multi_reduction <add>, %87, %cst_30 [1] : vector<8x128xf32> to vector<8xf32>
    %89 = vector.shape_cast %15 : vector<1x1xf32> to vector<1xf32>
    %90 = vector.broadcast %89 : vector<1xf32> to vector<8xf32>
    %91 = arith.addf %88, %90 : vector<8xf32>
    %c1 = arith.constant 1 : index
    %c0_31 = arith.constant 0 : index
    %92 = vector.load %arg9[%c1, %c0_31] : memref<8x8xf32, #tpu.memory_space<vmem>>, vector<1x8xf32>
    %93 = vector.shape_cast %92 : vector<1x8xf32> to vector<8xf32>
    %94 = vector.shape_cast %91 : vector<8xf32> to vector<1x8xf32>
    tpu.vector_store %arg9[%c1, %c0_31], %94 {strides = array<i32>} : memref<8x8xf32, #tpu.memory_space<vmem>>, vector<1x8xf32>,
    %95 = vector.extract_strided_slice %11 {offsets = [16, 0], sizes = [8, 384], strides = [1, 1]} : vector<64x384xf32> to vector<8x384xf32>
    %cst_32 = arith.constant dense<0.000000e+00> : vector<8x384xf32>
    %96 = tpu.matmul %85, %12, %cst_32 {dimension_numbers = #tpu.dot_dimension_numbers<[1], [0], [0], [1], [0, 0, 1, 1], [], []>} : vector<8x128xf32>, vector<128x384xf32>, vector<8x384xf32> -> vector<8x384xf32>
    %97 = vector.extract_strided_slice %95 {offsets = [0, 0], sizes = [8, 128], strides = [1, 1]} : vector<8x384xf32> to vector<8x128xf32>
    %98 = vector.extract_strided_slice %96 {offsets = [0, 0], sizes = [8, 128], strides = [1, 1]} : vector<8x384xf32> to vector<8x128xf32>
    %99 = arith.addf %97, %98 : vector<8x128xf32>
    %100 = arith.negf %99 : vector<8x128xf32>
    %101 = math.exp %100 : vector<8x128xf32>
    %cst_33 = arith.constant 1.000000e+00 : f32
    %102 = vector.broadcast %cst_33 : f32 to vector<8x128xf32>
    %103 = arith.addf %102, %101 : vector<8x128xf32>
    %104 = arith.divf %102, %103 : vector<8x128xf32>
    %105 = vector.extract_strided_slice %95 {offsets = [0, 128], sizes = [8, 128], strides = [1, 1]} : vector<8x384xf32> to vector<8x128xf32>
    %106 = vector.extract_strided_slice %96 {offsets = [0, 128], sizes = [8, 128], strides = [1, 1]} : vector<8x384xf32> to vector<8x128xf32>
    %107 = arith.addf %105, %106 : vector<8x128xf32>
    %108 = arith.negf %107 : vector<8x128xf32>
    %109 = math.exp %108 : vector<8x128xf32>
    %cst_34 = arith.constant 1.000000e+00 : f32
    %110 = vector.broadcast %cst_34 : f32 to vector<8x128xf32>
    %111 = arith.addf %110, %109 : vector<8x128xf32>
    %112 = arith.divf %110, %111 : vector<8x128xf32>
    %113 = vector.extract_strided_slice %95 {offsets = [0, 256], sizes = [8, 128], strides = [1, 1]} : vector<8x384xf32> to vector<8x128xf32>
    %114 = vector.extract_strided_slice %96 {offsets = [0, 256], sizes = [8, 128], strides = [1, 1]} : vector<8x384xf32> to vector<8x128xf32>
    %115 = vector.broadcast %13 : vector<1x128xf32> to vector<8x128xf32>
    %116 = arith.addf %114, %115 : vector<8x128xf32>
    %117 = arith.mulf %104, %116 : vector<8x128xf32>
    %118 = arith.addf %113, %117 : vector<8x128xf32>
    %119 = math.tanh %118 : vector<8x128xf32>
    %cst_35 = arith.constant 1.000000e+00 : f32
    %120 = vector.broadcast %cst_35 : f32 to vector<8x128xf32>
    %121 = arith.subf %120, %112 : vector<8x128xf32>
    %122 = arith.mulf %121, %119 : vector<8x128xf32>
    %123 = arith.mulf %112, %85 : vector<8x128xf32>
    %124 = arith.addf %122, %123 : vector<8x128xf32>
    %125 = vector.broadcast %14 : vector<1x128xf32> to vector<8x128xf32>
    %126 = arith.mulf %124, %125 : vector<8x128xf32>
    %cst_36 = arith.constant dense<0.000000e+00> : vector<8xf32>
    %127 = vector.multi_reduction <add>, %126, %cst_36 [1] : vector<8x128xf32> to vector<8xf32>
    %128 = vector.shape_cast %15 : vector<1x1xf32> to vector<1xf32>
    %129 = vector.broadcast %128 : vector<1xf32> to vector<8xf32>
    %130 = arith.addf %127, %129 : vector<8xf32>
    %c2 = arith.constant 2 : index
    %c0_37 = arith.constant 0 : index
    %131 = vector.load %arg9[%c2, %c0_37] : memref<8x8xf32, #tpu.memory_space<vmem>>, vector<1x8xf32>
    %132 = vector.shape_cast %131 : vector<1x8xf32> to vector<8xf32>
    %133 = vector.shape_cast %130 : vector<8xf32> to vector<1x8xf32>
    tpu.vector_store %arg9[%c2, %c0_37], %133 {strides = array<i32>} : memref<8x8xf32, #tpu.memory_space<vmem>>, vector<1x8xf32>,
    %134 = vector.extract_strided_slice %11 {offsets = [24, 0], sizes = [8, 384], strides = [1, 1]} : vector<64x384xf32> to vector<8x384xf32>
    %cst_38 = arith.constant dense<0.000000e+00> : vector<8x384xf32>
    %135 = tpu.matmul %124, %12, %cst_38 {dimension_numbers = #tpu.dot_dimension_numbers<[1], [0], [0], [1], [0, 0, 1, 1], [], []>} : vector<8x128xf32>, vector<128x384xf32>, vector<8x384xf32> -> vector<8x384xf32>
    %136 = vector.extract_strided_slice %134 {offsets = [0, 0], sizes = [8, 128], strides = [1, 1]} : vector<8x384xf32> to vector<8x128xf32>
    %137 = vector.extract_strided_slice %135 {offsets = [0, 0], sizes = [8, 128], strides = [1, 1]} : vector<8x384xf32> to vector<8x128xf32>
    %138 = arith.addf %136, %137 : vector<8x128xf32>
    %139 = arith.negf %138 : vector<8x128xf32>
    %140 = math.exp %139 : vector<8x128xf32>
    %cst_39 = arith.constant 1.000000e+00 : f32
    %141 = vector.broadcast %cst_39 : f32 to vector<8x128xf32>
    %142 = arith.addf %141, %140 : vector<8x128xf32>
    %143 = arith.divf %141, %142 : vector<8x128xf32>
    %144 = vector.extract_strided_slice %134 {offsets = [0, 128], sizes = [8, 128], strides = [1, 1]} : vector<8x384xf32> to vector<8x128xf32>
    %145 = vector.extract_strided_slice %135 {offsets = [0, 128], sizes = [8, 128], strides = [1, 1]} : vector<8x384xf32> to vector<8x128xf32>
    %146 = arith.addf %144, %145 : vector<8x128xf32>
    %147 = arith.negf %146 : vector<8x128xf32>
    %148 = math.exp %147 : vector<8x128xf32>
    %cst_40 = arith.constant 1.000000e+00 : f32
    %149 = vector.broadcast %cst_40 : f32 to vector<8x128xf32>
    %150 = arith.addf %149, %148 : vector<8x128xf32>
    %151 = arith.divf %149, %150 : vector<8x128xf32>
    %152 = vector.extract_strided_slice %134 {offsets = [0, 256], sizes = [8, 128], strides = [1, 1]} : vector<8x384xf32> to vector<8x128xf32>
    %153 = vector.extract_strided_slice %135 {offsets = [0, 256], sizes = [8, 128], strides = [1, 1]} : vector<8x384xf32> to vector<8x128xf32>
    %154 = vector.broadcast %13 : vector<1x128xf32> to vector<8x128xf32>
    %155 = arith.addf %153, %154 : vector<8x128xf32>
    %156 = arith.mulf %143, %155 : vector<8x128xf32>
    %157 = arith.addf %152, %156 : vector<8x128xf32>
    %158 = math.tanh %157 : vector<8x128xf32>
    %cst_41 = arith.constant 1.000000e+00 : f32
    %159 = vector.broadcast %cst_41 : f32 to vector<8x128xf32>
    %160 = arith.subf %159, %151 : vector<8x128xf32>
    %161 = arith.mulf %160, %158 : vector<8x128xf32>
    %162 = arith.mulf %151, %124 : vector<8x128xf32>
    %163 = arith.addf %161, %162 : vector<8x128xf32>
    %164 = vector.broadcast %14 : vector<1x128xf32> to vector<8x128xf32>
    %165 = arith.mulf %163, %164 : vector<8x128xf32>
    %cst_42 = arith.constant dense<0.000000e+00> : vector<8xf32>
    %166 = vector.multi_reduction <add>, %165, %cst_42 [1] : vector<8x128xf32> to vector<8xf32>
    %167 = vector.shape_cast %15 : vector<1x1xf32> to vector<1xf32>
    %168 = vector.broadcast %167 : vector<1xf32> to vector<8xf32>
    %169 = arith.addf %166, %168 : vector<8xf32>
    %c3 = arith.constant 3 : index
    %c0_43 = arith.constant 0 : index
    %170 = vector.load %arg9[%c3, %c0_43] : memref<8x8xf32, #tpu.memory_space<vmem>>, vector<1x8xf32>
    %171 = vector.shape_cast %170 : vector<1x8xf32> to vector<8xf32>
    %172 = vector.shape_cast %169 : vector<8xf32> to vector<1x8xf32>
    tpu.vector_store %arg9[%c3, %c0_43], %172 {strides = array<i32>} : memref<8x8xf32, #tpu.memory_space<vmem>>, vector<1x8xf32>,
    %173 = vector.extract_strided_slice %11 {offsets = [32, 0], sizes = [8, 384], strides = [1, 1]} : vector<64x384xf32> to vector<8x384xf32>
    %cst_44 = arith.constant dense<0.000000e+00> : vector<8x384xf32>
    %174 = tpu.matmul %163, %12, %cst_44 {dimension_numbers = #tpu.dot_dimension_numbers<[1], [0], [0], [1], [0, 0, 1, 1], [], []>} : vector<8x128xf32>, vector<128x384xf32>, vector<8x384xf32> -> vector<8x384xf32>
    %175 = vector.extract_strided_slice %173 {offsets = [0, 0], sizes = [8, 128], strides = [1, 1]} : vector<8x384xf32> to vector<8x128xf32>
    %176 = vector.extract_strided_slice %174 {offsets = [0, 0], sizes = [8, 128], strides = [1, 1]} : vector<8x384xf32> to vector<8x128xf32>
    %177 = arith.addf %175, %176 : vector<8x128xf32>
    %178 = arith.negf %177 : vector<8x128xf32>
    %179 = math.exp %178 : vector<8x128xf32>
    %cst_45 = arith.constant 1.000000e+00 : f32
    %180 = vector.broadcast %cst_45 : f32 to vector<8x128xf32>
    %181 = arith.addf %180, %179 : vector<8x128xf32>
    %182 = arith.divf %180, %181 : vector<8x128xf32>
    %183 = vector.extract_strided_slice %173 {offsets = [0, 128], sizes = [8, 128], strides = [1, 1]} : vector<8x384xf32> to vector<8x128xf32>
    %184 = vector.extract_strided_slice %174 {offsets = [0, 128], sizes = [8, 128], strides = [1, 1]} : vector<8x384xf32> to vector<8x128xf32>
    %185 = arith.addf %183, %184 : vector<8x128xf32>
    %186 = arith.negf %185 : vector<8x128xf32>
    %187 = math.exp %186 : vector<8x128xf32>
    %cst_46 = arith.constant 1.000000e+00 : f32
    %188 = vector.broadcast %cst_46 : f32 to vector<8x128xf32>
    %189 = arith.addf %188, %187 : vector<8x128xf32>
    %190 = arith.divf %188, %189 : vector<8x128xf32>
    %191 = vector.extract_strided_slice %173 {offsets = [0, 256], sizes = [8, 128], strides = [1, 1]} : vector<8x384xf32> to vector<8x128xf32>
    %192 = vector.extract_strided_slice %174 {offsets = [0, 256], sizes = [8, 128], strides = [1, 1]} : vector<8x384xf32> to vector<8x128xf32>
    %193 = vector.broadcast %13 : vector<1x128xf32> to vector<8x128xf32>
    %194 = arith.addf %192, %193 : vector<8x128xf32>
    %195 = arith.mulf %182, %194 : vector<8x128xf32>
    %196 = arith.addf %191, %195 : vector<8x128xf32>
    %197 = math.tanh %196 : vector<8x128xf32>
    %cst_47 = arith.constant 1.000000e+00 : f32
    %198 = vector.broadcast %cst_47 : f32 to vector<8x128xf32>
    %199 = arith.subf %198, %190 : vector<8x128xf32>
    %200 = arith.mulf %199, %197 : vector<8x128xf32>
    %201 = arith.mulf %190, %163 : vector<8x128xf32>
    %202 = arith.addf %200, %201 : vector<8x128xf32>
    %203 = vector.broadcast %14 : vector<1x128xf32> to vector<8x128xf32>
    %204 = arith.mulf %202, %203 : vector<8x128xf32>
    %cst_48 = arith.constant dense<0.000000e+00> : vector<8xf32>
    %205 = vector.multi_reduction <add>, %204, %cst_48 [1] : vector<8x128xf32> to vector<8xf32>
    %206 = vector.shape_cast %15 : vector<1x1xf32> to vector<1xf32>
    %207 = vector.broadcast %206 : vector<1xf32> to vector<8xf32>
    %208 = arith.addf %205, %207 : vector<8xf32>
    %c4 = arith.constant 4 : index
    %c0_49 = arith.constant 0 : index
    %209 = vector.load %arg9[%c4, %c0_49] : memref<8x8xf32, #tpu.memory_space<vmem>>, vector<1x8xf32>
    %210 = vector.shape_cast %209 : vector<1x8xf32> to vector<8xf32>
    %211 = vector.shape_cast %208 : vector<8xf32> to vector<1x8xf32>
    tpu.vector_store %arg9[%c4, %c0_49], %211 {strides = array<i32>} : memref<8x8xf32, #tpu.memory_space<vmem>>, vector<1x8xf32>,
    %212 = vector.extract_strided_slice %11 {offsets = [40, 0], sizes = [8, 384], strides = [1, 1]} : vector<64x384xf32> to vector<8x384xf32>
    %cst_50 = arith.constant dense<0.000000e+00> : vector<8x384xf32>
    %213 = tpu.matmul %202, %12, %cst_50 {dimension_numbers = #tpu.dot_dimension_numbers<[1], [0], [0], [1], [0, 0, 1, 1], [], []>} : vector<8x128xf32>, vector<128x384xf32>, vector<8x384xf32> -> vector<8x384xf32>
    %214 = vector.extract_strided_slice %212 {offsets = [0, 0], sizes = [8, 128], strides = [1, 1]} : vector<8x384xf32> to vector<8x128xf32>
    %215 = vector.extract_strided_slice %213 {offsets = [0, 0], sizes = [8, 128], strides = [1, 1]} : vector<8x384xf32> to vector<8x128xf32>
    %216 = arith.addf %214, %215 : vector<8x128xf32>
    %217 = arith.negf %216 : vector<8x128xf32>
    %218 = math.exp %217 : vector<8x128xf32>
    %cst_51 = arith.constant 1.000000e+00 : f32
    %219 = vector.broadcast %cst_51 : f32 to vector<8x128xf32>
    %220 = arith.addf %219, %218 : vector<8x128xf32>
    %221 = arith.divf %219, %220 : vector<8x128xf32>
    %222 = vector.extract_strided_slice %212 {offsets = [0, 128], sizes = [8, 128], strides = [1, 1]} : vector<8x384xf32> to vector<8x128xf32>
    %223 = vector.extract_strided_slice %213 {offsets = [0, 128], sizes = [8, 128], strides = [1, 1]} : vector<8x384xf32> to vector<8x128xf32>
    %224 = arith.addf %222, %223 : vector<8x128xf32>
    %225 = arith.negf %224 : vector<8x128xf32>
    %226 = math.exp %225 : vector<8x128xf32>
    %cst_52 = arith.constant 1.000000e+00 : f32
    %227 = vector.broadcast %cst_52 : f32 to vector<8x128xf32>
    %228 = arith.addf %227, %226 : vector<8x128xf32>
    %229 = arith.divf %227, %228 : vector<8x128xf32>
    %230 = vector.extract_strided_slice %212 {offsets = [0, 256], sizes = [8, 128], strides = [1, 1]} : vector<8x384xf32> to vector<8x128xf32>
    %231 = vector.extract_strided_slice %213 {offsets = [0, 256], sizes = [8, 128], strides = [1, 1]} : vector<8x384xf32> to vector<8x128xf32>
    %232 = vector.broadcast %13 : vector<1x128xf32> to vector<8x128xf32>
    %233 = arith.addf %231, %232 : vector<8x128xf32>
    %234 = arith.mulf %221, %233 : vector<8x128xf32>
    %235 = arith.addf %230, %234 : vector<8x128xf32>
    %236 = math.tanh %235 : vector<8x128xf32>
    %cst_53 = arith.constant 1.000000e+00 : f32
    %237 = vector.broadcast %cst_53 : f32 to vector<8x128xf32>
    %238 = arith.subf %237, %229 : vector<8x128xf32>
    %239 = arith.mulf %238, %236 : vector<8x128xf32>
    %240 = arith.mulf %229, %202 : vector<8x128xf32>
    %241 = arith.addf %239, %240 : vector<8x128xf32>
    %242 = vector.broadcast %14 : vector<1x128xf32> to vector<8x128xf32>
    %243 = arith.mulf %241, %242 : vector<8x128xf32>
    %cst_54 = arith.constant dense<0.000000e+00> : vector<8xf32>
    %244 = vector.multi_reduction <add>, %243, %cst_54 [1] : vector<8x128xf32> to vector<8xf32>
    %245 = vector.shape_cast %15 : vector<1x1xf32> to vector<1xf32>
    %246 = vector.broadcast %245 : vector<1xf32> to vector<8xf32>
    %247 = arith.addf %244, %246 : vector<8xf32>
    %c5 = arith.constant 5 : index
    %c0_55 = arith.constant 0 : index
    %248 = vector.load %arg9[%c5, %c0_55] : memref<8x8xf32, #tpu.memory_space<vmem>>, vector<1x8xf32>
    %249 = vector.shape_cast %248 : vector<1x8xf32> to vector<8xf32>
    %250 = vector.shape_cast %247 : vector<8xf32> to vector<1x8xf32>
    tpu.vector_store %arg9[%c5, %c0_55], %250 {strides = array<i32>} : memref<8x8xf32, #tpu.memory_space<vmem>>, vector<1x8xf32>,
    %251 = vector.extract_strided_slice %11 {offsets = [48, 0], sizes = [8, 384], strides = [1, 1]} : vector<64x384xf32> to vector<8x384xf32>
    %cst_56 = arith.constant dense<0.000000e+00> : vector<8x384xf32>
    %252 = tpu.matmul %241, %12, %cst_56 {dimension_numbers = #tpu.dot_dimension_numbers<[1], [0], [0], [1], [0, 0, 1, 1], [], []>} : vector<8x128xf32>, vector<128x384xf32>, vector<8x384xf32> -> vector<8x384xf32>
    %253 = vector.extract_strided_slice %251 {offsets = [0, 0], sizes = [8, 128], strides = [1, 1]} : vector<8x384xf32> to vector<8x128xf32>
    %254 = vector.extract_strided_slice %252 {offsets = [0, 0], sizes = [8, 128], strides = [1, 1]} : vector<8x384xf32> to vector<8x128xf32>
    %255 = arith.addf %253, %254 : vector<8x128xf32>
    %256 = arith.negf %255 : vector<8x128xf32>
    %257 = math.exp %256 : vector<8x128xf32>
    %cst_57 = arith.constant 1.000000e+00 : f32
    %258 = vector.broadcast %cst_57 : f32 to vector<8x128xf32>
    %259 = arith.addf %258, %257 : vector<8x128xf32>
    %260 = arith.divf %258, %259 : vector<8x128xf32>
    %261 = vector.extract_strided_slice %251 {offsets = [0, 128], sizes = [8, 128], strides = [1, 1]} : vector<8x384xf32> to vector<8x128xf32>
    %262 = vector.extract_strided_slice %252 {offsets = [0, 128], sizes = [8, 128], strides = [1, 1]} : vector<8x384xf32> to vector<8x128xf32>
    %263 = arith.addf %261, %262 : vector<8x128xf32>
    %264 = arith.negf %263 : vector<8x128xf32>
    %265 = math.exp %264 : vector<8x128xf32>
    %cst_58 = arith.constant 1.000000e+00 : f32
    %266 = vector.broadcast %cst_58 : f32 to vector<8x128xf32>
    %267 = arith.addf %266, %265 : vector<8x128xf32>
    %268 = arith.divf %266, %267 : vector<8x128xf32>
    %269 = vector.extract_strided_slice %251 {offsets = [0, 256], sizes = [8, 128], strides = [1, 1]} : vector<8x384xf32> to vector<8x128xf32>
    %270 = vector.extract_strided_slice %252 {offsets = [0, 256], sizes = [8, 128], strides = [1, 1]} : vector<8x384xf32> to vector<8x128xf32>
    %271 = vector.broadcast %13 : vector<1x128xf32> to vector<8x128xf32>
    %272 = arith.addf %270, %271 : vector<8x128xf32>
    %273 = arith.mulf %260, %272 : vector<8x128xf32>
    %274 = arith.addf %269, %273 : vector<8x128xf32>
    %275 = math.tanh %274 : vector<8x128xf32>
    %cst_59 = arith.constant 1.000000e+00 : f32
    %276 = vector.broadcast %cst_59 : f32 to vector<8x128xf32>
    %277 = arith.subf %276, %268 : vector<8x128xf32>
    %278 = arith.mulf %277, %275 : vector<8x128xf32>
    %279 = arith.mulf %268, %241 : vector<8x128xf32>
    %280 = arith.addf %278, %279 : vector<8x128xf32>
    %281 = vector.broadcast %14 : vector<1x128xf32> to vector<8x128xf32>
    %282 = arith.mulf %280, %281 : vector<8x128xf32>
    %cst_60 = arith.constant dense<0.000000e+00> : vector<8xf32>
    %283 = vector.multi_reduction <add>, %282, %cst_60 [1] : vector<8x128xf32> to vector<8xf32>
    %284 = vector.shape_cast %15 : vector<1x1xf32> to vector<1xf32>
    %285 = vector.broadcast %284 : vector<1xf32> to vector<8xf32>
    %286 = arith.addf %283, %285 : vector<8xf32>
    %c6 = arith.constant 6 : index
    %c0_61 = arith.constant 0 : index
    %287 = vector.load %arg9[%c6, %c0_61] : memref<8x8xf32, #tpu.memory_space<vmem>>, vector<1x8xf32>
    %288 = vector.shape_cast %287 : vector<1x8xf32> to vector<8xf32>
    %289 = vector.shape_cast %286 : vector<8xf32> to vector<1x8xf32>
    tpu.vector_store %arg9[%c6, %c0_61], %289 {strides = array<i32>} : memref<8x8xf32, #tpu.memory_space<vmem>>, vector<1x8xf32>,
    %290 = vector.extract_strided_slice %11 {offsets = [56, 0], sizes = [8, 384], strides = [1, 1]} : vector<64x384xf32> to vector<8x384xf32>
    %cst_62 = arith.constant dense<0.000000e+00> : vector<8x384xf32>
    %291 = tpu.matmul %280, %12, %cst_62 {dimension_numbers = #tpu.dot_dimension_numbers<[1], [0], [0], [1], [0, 0, 1, 1], [], []>} : vector<8x128xf32>, vector<128x384xf32>, vector<8x384xf32> -> vector<8x384xf32>
    %292 = vector.extract_strided_slice %290 {offsets = [0, 0], sizes = [8, 128], strides = [1, 1]} : vector<8x384xf32> to vector<8x128xf32>
    %293 = vector.extract_strided_slice %291 {offsets = [0, 0], sizes = [8, 128], strides = [1, 1]} : vector<8x384xf32> to vector<8x128xf32>
    %294 = arith.addf %292, %293 : vector<8x128xf32>
    %295 = arith.negf %294 : vector<8x128xf32>
    %296 = math.exp %295 : vector<8x128xf32>
    %cst_63 = arith.constant 1.000000e+00 : f32
    %297 = vector.broadcast %cst_63 : f32 to vector<8x128xf32>
    %298 = arith.addf %297, %296 : vector<8x128xf32>
    %299 = arith.divf %297, %298 : vector<8x128xf32>
    %300 = vector.extract_strided_slice %290 {offsets = [0, 128], sizes = [8, 128], strides = [1, 1]} : vector<8x384xf32> to vector<8x128xf32>
    %301 = vector.extract_strided_slice %291 {offsets = [0, 128], sizes = [8, 128], strides = [1, 1]} : vector<8x384xf32> to vector<8x128xf32>
    %302 = arith.addf %300, %301 : vector<8x128xf32>
    %303 = arith.negf %302 : vector<8x128xf32>
    %304 = math.exp %303 : vector<8x128xf32>
    %cst_64 = arith.constant 1.000000e+00 : f32
    %305 = vector.broadcast %cst_64 : f32 to vector<8x128xf32>
    %306 = arith.addf %305, %304 : vector<8x128xf32>
    %307 = arith.divf %305, %306 : vector<8x128xf32>
    %308 = vector.extract_strided_slice %290 {offsets = [0, 256], sizes = [8, 128], strides = [1, 1]} : vector<8x384xf32> to vector<8x128xf32>
    %309 = vector.extract_strided_slice %291 {offsets = [0, 256], sizes = [8, 128], strides = [1, 1]} : vector<8x384xf32> to vector<8x128xf32>
    %310 = vector.broadcast %13 : vector<1x128xf32> to vector<8x128xf32>
    %311 = arith.addf %309, %310 : vector<8x128xf32>
    %312 = arith.mulf %299, %311 : vector<8x128xf32>
    %313 = arith.addf %308, %312 : vector<8x128xf32>
    %314 = math.tanh %313 : vector<8x128xf32>
    %cst_65 = arith.constant 1.000000e+00 : f32
    %315 = vector.broadcast %cst_65 : f32 to vector<8x128xf32>
    %316 = arith.subf %315, %307 : vector<8x128xf32>
    %317 = arith.mulf %316, %314 : vector<8x128xf32>
    %318 = arith.mulf %307, %280 : vector<8x128xf32>
    %319 = arith.addf %317, %318 : vector<8x128xf32>
    %320 = vector.broadcast %14 : vector<1x128xf32> to vector<8x128xf32>
    %321 = arith.mulf %319, %320 : vector<8x128xf32>
    %cst_66 = arith.constant dense<0.000000e+00> : vector<8xf32>
    %322 = vector.multi_reduction <add>, %321, %cst_66 [1] : vector<8x128xf32> to vector<8xf32>
    %323 = vector.shape_cast %15 : vector<1x1xf32> to vector<1xf32>
    %324 = vector.broadcast %323 : vector<1xf32> to vector<8xf32>
    %325 = arith.addf %322, %324 : vector<8xf32>
    %c7 = arith.constant 7 : index
    %c0_67 = arith.constant 0 : index
    %326 = vector.load %arg9[%c7, %c0_67] : memref<8x8xf32, #tpu.memory_space<vmem>>, vector<1x8xf32>
    %327 = vector.shape_cast %326 : vector<1x8xf32> to vector<8xf32>
    %328 = vector.shape_cast %325 : vector<8xf32> to vector<1x8xf32>
    tpu.vector_store %arg9[%c7, %c0_67], %328 {strides = array<i32>} : memref<8x8xf32, #tpu.memory_space<vmem>>, vector<1x8xf32>,
    return
  }
}

</mosaic_0001>

<llo_original>
// kernel: critic_rnn_forward.1
$region0: #{critic_rnn_forward.1}
  #allocation0 [shape = 'u32[]', space=smem, size = 0x4, offset = 0x4, fixed_abs, tag = 'smem constant byte address 0x4 - core index']
  #allocation1 [shape = 'u32[144,128]{1,0:T(1,128)}', space=vmem, size = 0x12000, scoped, tag = 'internal scratch']
  #allocation2 [shape = 'f32[1,1]{1,0:T(1,128)S(1)}', space=vmem, size = 0x200, scoped, tag = 'scoped memory for critic_rnn_forward.1']
  %s0 = inlined_call_operand.vmem [shape: f32[64,128], index: 0, kind: input, shape index: {}]
  %s1 = inlined_call_operand.vmem [shape: f32[128,128], index: 1, kind: input, shape index: {}]
  %s2 = inlined_call_operand.vmem [shape: f32[1,128], index: 2, kind: input, shape index: {}]
  %s3 = inlined_call_operand.vmem [shape: f32[128,384], index: 3, kind: input, shape index: {}]
  %s4 = inlined_call_operand.vmem [shape: f32[1,384], index: 4, kind: input, shape index: {}]
  %s5 = inlined_call_operand.vmem [shape: f32[128,384], index: 5, kind: input, shape index: {}]
  %s6 = inlined_call_operand.vmem [shape: f32[1,128], index: 6, kind: input, shape index: {}]
  %s7 = inlined_call_operand.vmem [shape: f32[1,128], index: 7, kind: input, shape index: {}]
  %s8 = inlined_call_operand.<no memory space> [shape: f32[1,1], index: 8, kind: input, shape index: {}]
  %s9 = inlined_call_operand.vmem [shape: f32[8,8], index: 9, kind: output, shape index: {}]
  %s10 = sld [smem:[#allocation0]]
  $region46: #{critic_rnn_forward.1} parent=0
    _
  %s12 = ssub.s32 1, %s10
  %s13 = scalar_select 0, %s12, %s10
  %v14 = vstv %s8
  %15 = vst [vmem:[#allocation2] sm:$0x1] %v14
  // Predicated region
  $region2: #{critic_rnn_forward.1} parent=0 // pred_check
    _
  $region3: #{critic_rnn_forward.1} parent=0 // pred_check_branch
    %17 = sbr.rel (0) target = $region5
  $region4: #{critic_rnn_forward.1} parent=0 // pred_region
    _
  $region5: #{critic_rnn_forward.1} parent=0 // pred_fallthru
    _
  // Predicated region
  $region6: #{critic_rnn_forward.1} parent=0 // pred_check
    _
  $region7: #{critic_rnn_forward.1} parent=0 // pred_check_branch
    %19 = sbr.rel (0) target = $region9
  $region8: #{critic_rnn_forward.1} parent=0 // pred_region
    _
  $region9: #{critic_rnn_forward.1} parent=0 // pred_fallthru
    _
  // Predicated region
  $region10: #{critic_rnn_forward.1} parent=0 // pred_check
    _
  $region11: #{critic_rnn_forward.1} parent=0 // pred_check_branch
    %21 = sbr.rel (0) target = $region13
  $region12: #{critic_rnn_forward.1} parent=0 // pred_region
    _
  $region13: #{critic_rnn_forward.1} parent=0 // pred_fallthru
    _
  // Predicated region
  $region14: #{critic_rnn_forward.1} parent=0 // pred_check
    _
  $region15: #{critic_rnn_forward.1} parent=0 // pred_check_branch
    %23 = sbr.rel (0) target = $region17
  $region16: #{critic_rnn_forward.1} parent=0 // pred_region
    _
  $region17: #{critic_rnn_forward.1} parent=0 // pred_fallthru
    _
  // Predicated region
  $region18: #{critic_rnn_forward.1} parent=0 // pred_check
    _
  $region19: #{critic_rnn_forward.1} parent=0 // pred_check_branch
    %25 = sbr.rel (0) target = $region21
  $region20: #{critic_rnn_forward.1} parent=0 // pred_region
    _
  $region21: #{critic_rnn_forward.1} parent=0 // pred_fallthru
    _
  // Predicated region
  $region22: #{critic_rnn_forward.1} parent=0 // pred_check
    _
  $region23: #{critic_rnn_forward.1} parent=0 // pred_check_branch
    %27 = sbr.rel (0) target = $region25
  $region24: #{critic_rnn_forward.1} parent=0 // pred_region
    _
  $region25: #{critic_rnn_forward.1} parent=0 // pred_fallthru
    _
  // Predicated region
  $region26: #{critic_rnn_forward.1} parent=0 // pred_check
    _
  $region27: #{critic_rnn_forward.1} parent=0 // pred_check_branch
    %29 = sbr.rel (0) target = $region29
  $region28: #{critic_rnn_forward.1} parent=0 // pred_region
    _
  $region29: #{critic_rnn_forward.1} parent=0 // pred_fallthru
    _
  // Predicated region
  $region30: #{critic_rnn_forward.1} parent=0 // pred_check
    _
  $region31: #{critic_rnn_forward.1} parent=0 // pred_check_branch
    %31 = sbr.rel (0) target = $region33
  $region32: #{critic_rnn_forward.1} parent=0 // pred_region
    _
  $region33: #{critic_rnn_forward.1} parent=0 // pred_fallthru
    _
  // Predicated region
  $region34: #{critic_rnn_forward.1} parent=0 // pred_check
    _
  $region35: #{critic_rnn_forward.1} parent=0 // pred_check_branch
    %33 = sbr.rel (0) target = $region37
  $region36: #{critic_rnn_forward.1} parent=0 // pred_region
    _
  $region37: #{critic_rnn_forward.1} parent=0 // pred_fallthru
    _
  %v34 = vld [vmem:[%s0] sm:$0xff]
  %v35 = vld [vmem:[%s0 + $0x8] sm:$0xff]
  %v36 = vld [vmem:[%s0 + $0x10] sm:$0xff]
  %v37 = vld [vmem:[%s0 + $0x18] sm:$0xff]
  %v38 = vld [vmem:[%s0 + $0x20] sm:$0xff]
  %v39 = vld [vmem:[%s0 + $0x28] sm:$0xff]
  %v40 = vld [vmem:[%s0 + $0x30] sm:$0xff]
  %v41 = vld [vmem:[%s0 + $0x38] sm:$0xff]
  %v42 = vld [vmem:[%s1] sm:$0xff]
  %v43 = vld [vmem:[%s1 + $0x8] sm:$0xff]
  %v44 = vld [vmem:[%s1 + $0x10] sm:$0xff]
  %v45 = vld [vmem:[%s1 + $0x18] sm:$0xff]
  %v46 = vld [vmem:[%s1 + $0x20] sm:$0xff]
  %v47 = vld [vmem:[%s1 + $0x28] sm:$0xff]
  %v48 = vld [vmem:[%s1 + $0x30] sm:$0xff]
  %v49 = vld [vmem:[%s1 + $0x38] sm:$0xff]
  %v50 = vld [vmem:[%s1 + $0x40] sm:$0xff]
  %v51 = vld [vmem:[%s1 + $0x48] sm:$0xff]
  %v52 = vld [vmem:[%s1 + $0x50] sm:$0xff]
  %v53 = vld [vmem:[%s1 + $0x58] sm:$0xff]
  %v54 = vld [vmem:[%s1 + $0x60] sm:$0xff]
  %v55 = vld [vmem:[%s1 + $0x68] sm:$0xff]
  %v56 = vld [vmem:[%s1 + $0x70] sm:$0xff]
  %v57 = vld [vmem:[%s1 + $0x78] sm:$0xff]
  %v58 = vld [vmem:[%s2] sm:$0x1]
  %v60 = vlaneseq
  %v61 = vshrl.u32 %v60, 7
  %v62 = vsub.s32 0, %v61
  %v63 = vrot.slane %v58, %v62
  %65 = vmatprep.subr.mxu0 0.0
  %66 = vmatpush1.msra.mxu0 %v42
  %67 = vmatprep.subr.mxu0 0.0
  %68 = vmatpush1.msra.mxu0 %v43
  %69 = vmatprep.subr.mxu0 0.0
  %70 = vmatpush1.msra.mxu0 %v44
  %71 = vmatprep.subr.mxu0 0.0
  %72 = vmatpush1.msra.mxu0 %v45
  %73 = vmatprep.subr.mxu0 0.0
  %74 = vmatpush1.msra.mxu0 %v46
  %75 = vmatprep.subr.mxu0 0.0
  %76 = vmatpush1.msra.mxu0 %v47
  %77 = vmatprep.subr.mxu0 0.0
  %78 = vmatpush1.msra.mxu0 %v48
  %79 = vmatprep.subr.mxu0 0.0
  %80 = vmatpush1.msra.mxu0 %v49
  %81 = vmatprep.subr.mxu0 0.0
  %82 = vmatpush1.msra.mxu0 %v50
  %83 = vmatprep.subr.mxu0 0.0
  %84 = vmatpush1.msra.mxu0 %v51
  %85 = vmatprep.subr.mxu0 0.0
  %86 = vmatpush1.msra.mxu0 %v52
  %87 = vmatprep.subr.mxu0 0.0
  %88 = vmatpush1.msra.mxu0 %v53
  %89 = vmatprep.subr.mxu0 0.0
  %90 = vmatpush1.msra.mxu0 %v54
  %91 = vmatprep.subr.mxu0 0.0
  %92 = vmatpush1.msra.mxu0 %v55
  %93 = vmatprep.subr.mxu0 0.0
  %94 = vmatpush1.msra.mxu0 %v56
  %95 = vmatprep.subr.mxu0 0.0
  %96 = vmatpush1.msra.mxu0 %v57
  %97 = vmatprep.subr.mxu0 0.0
  %98 = vmatpush1.msra.mxu0 0.0
  %99 = vmatprep.subr.mxu0 0.0
  %100 = vmatpush1.msra.mxu0 0.0
  %101 = vmatprep.subr.mxu0 0.0
  %102 = vmatpush1.msra.mxu0 0.0
  %103 = vmatprep.subr.mxu0 0.0
  %104 = vmatpush1.msra.mxu0 0.0
  %105 = vmatprep.subr.mxu0 0.0
  %106 = vmatpush1.msra.mxu0 0.0
  %107 = vmatprep.subr.mxu0 0.0
  %108 = vmatpush1.msra.mxu0 0.0
  %109 = vmatprep.subr.mxu0 0.0
  %110 = vmatpush1.msra.mxu0 0.0
  %111 = vmatprep.subr.mxu0 0.0
  %112 = vmatpush1.msra.mxu0 0.0
  %113 = vmatprep.subr.mxu0 0.0
  %114 = vmatpush1.msra.mxu0 0.0
  %115 = vmatprep.subr.mxu0 0.0
  %116 = vmatpush1.msra.mxu0 0.0
  %117 = vmatprep.subr.mxu0 0.0
  %118 = vmatpush1.msra.mxu0 0.0
  %119 = vmatprep.subr.mxu0 0.0
  %120 = vmatpush1.msra.mxu0 0.0
  %121 = vmatprep.subr.mxu0 0.0
  %122 = vmatpush1.msra.mxu0 0.0
  %123 = vmatprep.subr.mxu0 0.0
  %124 = vmatpush1.msra.mxu0 0.0
  %125 = vmatprep.subr.mxu0 0.0
  %126 = vmatpush1.msra.mxu0 0.0
  %127 = vmatprep.subr.mxu0 0.0
  %128 = vmatpush1.msra.mxu0 0.0
  %129 = vmatprep.mubr.f32.mxu0 0.0
  %130 = vmatmul.mubr.f32.gmra.mrb[0].mxu0 %v34
  %v131 = vpop.f32.mrb[0].mxu0
  %v132 = vadd.f32 %v63, %v131
  %v133 = vpop.f32.mrb[0].mxu0
  %134 = vmatprep.mubr.f32.mxu0 0.0
  %135 = vmatmul.mubr.f32.gmra.mrb[0].mxu0 %v35
  %v136 = vpop.f32.mrb[0].mxu0
  %v137 = vadd.f32 %v63, %v136
  %v138 = vpop.f32.mrb[0].mxu0
  %139 = vmatprep.mubr.f32.mxu0 0.0
  %140 = vmatmul.mubr.f32.gmra.mrb[0].mxu0 %v36
  %v141 = vpop.f32.mrb[0].mxu0
  %v142 = vadd.f32 %v63, %v141
  %v143 = vpop.f32.mrb[0].mxu0
  %144 = vmatprep.mubr.f32.mxu0 0.0
  %145 = vmatmul.mubr.f32.gmra.mrb[0].mxu0 %v37
  %v146 = vpop.f32.mrb[0].mxu0
  %v147 = vadd.f32 %v63, %v146
  %v148 = vpop.f32.mrb[0].mxu0
  %149 = vmatprep.mubr.f32.mxu0 0.0
  %150 = vmatmul.mubr.f32.gmra.mrb[0].mxu0 %v38
  %v151 = vpop.f32.mrb[0].mxu0
  %v152 = vadd.f32 %v63, %v151
  %v153 = vpop.f32.mrb[0].mxu0
  %154 = vmatprep.mubr.f32.mxu0 0.0
  %155 = vmatmul.mubr.f32.gmra.mrb[0].mxu0 %v39
  %v156 = vpop.f32.mrb[0].mxu0
  %v157 = vadd.f32 %v63, %v156
  %v158 = vpop.f32.mrb[0].mxu0
  %159 = vmatprep.mubr.f32.mxu0 0.0
  %160 = vmatmul.mubr.f32.gmra.mrb[0].mxu0 %v40
  %v161 = vpop.f32.mrb[0].mxu0
  %v162 = vadd.f32 %v63, %v161
  %v163 = vpop.f32.mrb[0].mxu0
  %164 = vmatprep.mubr.f32.mxu0 0.0
  %165 = vmatmul.mubr.f32.gmra.mrb[0].mxu0 %v41
  %v166 = vpop.f32.mrb[0].mxu0
  %v167 = vadd.f32 %v63, %v166
  %v168 = vpop.f32.mrb[0].mxu0
  %169 = vdwg.mxu0
  %v170 = vtanh.pop %v132
  %v171 = vtanh.pop %v137
  %v172 = vtanh.pop %v142
  %v173 = vtanh.pop %v147
  %v174 = vtanh.pop %v152
  %v175 = vtanh.pop %v157
  %v176 = vtanh.pop %v162
  %v177 = vtanh.pop %v167
  %v178 = vld [vmem:[%s3] sm:$0xff]
  %v179 = vld [vmem:[%s3 + $0x8] sm:$0xff]
  %v180 = vld [vmem:[%s3 + $0x10] sm:$0xff]
  %v181 = vld [vmem:[%s3 + $0x18] sm:$0xff]
  %v182 = vld [vmem:[%s3 + $0x20] sm:$0xff]
  %v183 = vld [vmem:[%s3 + $0x28] sm:$0xff]
  %v184 = vld [vmem:[%s3 + $0x30] sm:$0xff]
  %v185 = vld [vmem:[%s3 + $0x38] sm:$0xff]
  %v186 = vld [vmem:[%s3 + $0x40] sm:$0xff]
  %v187 = vld [vmem:[%s3 + $0x48] sm:$0xff]
  %v188 = vld [vmem:[%s3 + $0x50] sm:$0xff]
  %v189 = vld [vmem:[%s3 + $0x58] sm:$0xff]
  %v190 = vld [vmem:[%s3 + $0x60] sm:$0xff]
  %v191 = vld [vmem:[%s3 + $0x68] sm:$0xff]
  %v192 = vld [vmem:[%s3 + $0x70] sm:$0xff]
  %v193 = vld [vmem:[%s3 + $0x78] sm:$0xff]
  %v194 = vld [vmem:[%s3 + $0x80] sm:$0xff]
  %v195 = vld [vmem:[%s3 + $0x88] sm:$0xff]
  %v196 = vld [vmem:[%s3 + $0x90] sm:$0xff]
  %v197 = vld [vmem:[%s3 + $0x98] sm:$0xff]
  %v198 = vld [vmem:[%s3 + $0xa0] sm:$0xff]
  %v199 = vld [vmem:[%s3 + $0xa8] sm:$0xff]
  %v200 = vld [vmem:[%s3 + $0xb0] sm:$0xff]
  %v201 = vld [vmem:[%s3 + $0xb8] sm:$0xff]
  %v202 = vld [vmem:[%s3 + $0xc0] sm:$0xff]
  %v203 = vld [vmem:[%s3 + $0xc8] sm:$0xff]
  %v204 = vld [vmem:[%s3 + $0xd0] sm:$0xff]
  %v205 = vld [vmem:[%s3 + $0xd8] sm:$0xff]
  %v206 = vld [vmem:[%s3 + $0xe0] sm:$0xff]
  %v207 = vld [vmem:[%s3 + $0xe8] sm:$0xff]
  %v208 = vld [vmem:[%s3 + $0xf0] sm:$0xff]
  %v209 = vld [vmem:[%s3 + $0xf8] sm:$0xff]
  %v210 = vld [vmem:[%s3 + $0x100] sm:$0xff]
  %v211 = vld [vmem:[%s3 + $0x108] sm:$0xff]
  %v212 = vld [vmem:[%s3 + $0x110] sm:$0xff]
  %v213 = vld [vmem:[%s3 + $0x118] sm:$0xff]
  %v214 = vld [vmem:[%s3 + $0x120] sm:$0xff]
  %v215 = vld [vmem:[%s3 + $0x128] sm:$0xff]
  %v216 = vld [vmem:[%s3 + $0x130] sm:$0xff]
  %v217 = vld [vmem:[%s3 + $0x138] sm:$0xff]
  %v218 = vld [vmem:[%s3 + $0x140] sm:$0xff]
  %v219 = vld [vmem:[%s3 + $0x148] sm:$0xff]
  %v220 = vld [vmem:[%s3 + $0x150] sm:$0xff]
  %v221 = vld [vmem:[%s3 + $0x158] sm:$0xff]
  %v222 = vld [vmem:[%s3 + $0x160] sm:$0xff]
  %v223 = vld [vmem:[%s3 + $0x168] sm:$0xff]
  %v224 = vld [vmem:[%s3 + $0x170] sm:$0xff]
  %v225 = vld [vmem:[%s3 + $0x178] sm:$0xff]
  %v226 = vld [vmem:[%s4] sm:$0x7]
  %v228 = vlaneseq
  %v229 = vshrl.u32 %v228, 7
  %v230 = vsub.s32 0, %v229
  %v231 = vrot.slane %v226, %v230
  %v232 = vlaneseq
  %v233 = vshrl.u32 %v232, 7
  %v234 = vsub.s32 1, %v233
  %v235 = vrot.slane %v226, %v234
  %v236 = vlaneseq
  %v237 = vshrl.u32 %v236, 7
  %v238 = vsub.s32 2, %v237
  %v239 = vrot.slane %v226, %v238
  %243 = vmatprep.subr.mxu0 %v179
  %244 = vmatpush1.msra.mxu0 %v178
  %245 = vmatprep.subr.mxu0 %v182
  %246 = vmatpush1.msra.mxu0 %v181
  %247 = vmatprep.subr.mxu0 %v185
  %248 = vmatpush1.msra.mxu0 %v184
  %249 = vmatprep.subr.mxu0 %v188
  %250 = vmatpush1.msra.mxu0 %v187
  %251 = vmatprep.subr.mxu0 %v191
  %252 = vmatpush1.msra.mxu0 %v190
  %253 = vmatprep.subr.mxu0 %v194
  %254 = vmatpush1.msra.mxu0 %v193
  %255 = vmatprep.subr.mxu0 %v197
  %256 = vmatpush1.msra.mxu0 %v196
  %257 = vmatprep.subr.mxu0 %v200
  %258 = vmatpush1.msra.mxu0 %v199
  %259 = vmatprep.subr.mxu0 %v203
  %260 = vmatpush1.msra.mxu0 %v202
  %261 = vmatprep.subr.mxu0 %v206
  %262 = vmatpush1.msra.mxu0 %v205
  %263 = vmatprep.subr.mxu0 %v209
  %264 = vmatpush1.msra.mxu0 %v208
  %265 = vmatprep.subr.mxu0 %v212
  %266 = vmatpush1.msra.mxu0 %v211
  %267 = vmatprep.subr.mxu0 %v215
  %268 = vmatpush1.msra.mxu0 %v214
  %269 = vmatprep.subr.mxu0 %v218
  %270 = vmatpush1.msra.mxu0 %v217
  %271 = vmatprep.subr.mxu0 %v221
  %272 = vmatpush1.msra.mxu0 %v220
  %273 = vmatprep.subr.mxu0 %v224
  %274 = vmatpush1.msra.mxu0 %v223
  %275 = vmatprep.subr.mxu0 0.0
  %276 = vmatpush1.msra.mxu0 0.0
  %277 = vmatprep.subr.mxu0 0.0
  %278 = vmatpush1.msra.mxu0 0.0
  %279 = vmatprep.subr.mxu0 0.0
  %280 = vmatpush1.msra.mxu0 0.0
  %281 = vmatprep.subr.mxu0 0.0
  %282 = vmatpush1.msra.mxu0 0.0
  %283 = vmatprep.subr.mxu0 0.0
  %284 = vmatpush1.msra.mxu0 0.0
  %285 = vmatprep.subr.mxu0 0.0
  %286 = vmatpush1.msra.mxu0 0.0
  %287 = vmatprep.subr.mxu0 0.0
  %288 = vmatpush1.msra.mxu0 0.0
  %289 = vmatprep.subr.mxu0 0.0
  %290 = vmatpush1.msra.mxu0 0.0
  %291 = vmatprep.subr.mxu0 0.0
  %292 = vmatpush1.msra.mxu0 0.0
  %293 = vmatprep.subr.mxu0 0.0
  %294 = vmatpush1.msra.mxu0 0.0
  %295 = vmatprep.subr.mxu0 0.0
  %296 = vmatpush1.msra.mxu0 0.0
  %297 = vmatprep.subr.mxu0 0.0
  %298 = vmatpush1.msra.mxu0 0.0
  %299 = vmatprep.subr.mxu0 0.0
  %300 = vmatpush1.msra.mxu0 0.0
  %301 = vmatprep.subr.mxu0 0.0
  %302 = vmatpush1.msra.mxu0 0.0
  %303 = vmatprep.subr.mxu0 0.0
  %304 = vmatpush1.msra.mxu0 0.0
  %305 = vmatprep.subr.mxu0 0.0
  %306 = vmatpush1.msra.mxu0 0.0
  %307 = vmatprep.mubr.f32.mxu0 0.0
  %308 = vmatmul.mubr.f32.gmra.mrb[0].mxu0 %v170
  %v309 = vpop.f32.mrb[0].mxu0
  %v310 = vadd.f32 %v231, %v309
  %v311 = vpop.f32.mrb[0].mxu0
  %v312 = vadd.f32 %v235, %v311
  %313 = vmatprep.mubr.f32.mxu0 0.0
  %314 = vmatmul.mubr.f32.gmra.mrb[0].mxu0 %v171
  %v315 = vpop.f32.mrb[0].mxu0
  %v316 = vadd.f32 %v231, %v315
  %v317 = vpop.f32.mrb[0].mxu0
  %v318 = vadd.f32 %v235, %v317
  %319 = vmatprep.mubr.f32.mxu0 0.0
  %320 = vmatmul.mubr.f32.gmra.mrb[0].mxu0 %v172
  %v321 = vpop.f32.mrb[0].mxu0
  %v322 = vadd.f32 %v231, %v321
  %v323 = vpop.f32.mrb[0].mxu0
  %v324 = vadd.f32 %v235, %v323
  %325 = vmatprep.mubr.f32.mxu0 0.0
  %326 = vmatmul.mubr.f32.gmra.mrb[0].mxu0 %v173
  %v327 = vpop.f32.mrb[0].mxu0
  %v328 = vadd.f32 %v231, %v327
  %v329 = vpop.f32.mrb[0].mxu0
  %v330 = vadd.f32 %v235, %v329
  %331 = vmatprep.mubr.f32.mxu0 0.0
  %332 = vmatmul.mubr.f32.gmra.mrb[0].mxu0 %v174
  %v333 = vpop.f32.mrb[0].mxu0
  %v334 = vadd.f32 %v231, %v333
  %v335 = vpop.f32.mrb[0].mxu0
  %v336 = vadd.f32 %v235, %v335
  %337 = vmatprep.mubr.f32.mxu0 0.0
  %338 = vmatmul.mubr.f32.gmra.mrb[0].mxu0 %v175
  %v339 = vpop.f32.mrb[0].mxu0
  %v340 = vadd.f32 %v231, %v339
  %v341 = vpop.f32.mrb[0].mxu0
  %v342 = vadd.f32 %v235, %v341
  %343 = vmatprep.mubr.f32.mxu0 0.0
  %344 = vmatmul.mubr.f32.gmra.mrb[0].mxu0 %v176
  %v345 = vpop.f32.mrb[0].mxu0
  %v346 = vadd.f32 %v231, %v345
  %v347 = vpop.f32.mrb[0].mxu0
  %v348 = vadd.f32 %v235, %v347
  %349 = vmatprep.mubr.f32.mxu0 0.0
  %350 = vmatmul.mubr.f32.gmra.mrb[0].mxu0 %v177
  %v351 = vpop.f32.mrb[0].mxu0
  %v352 = vadd.f32 %v231, %v351
  %v353 = vpop.f32.mrb[0].mxu0
  %v354 = vadd.f32 %v235, %v353
  %355 = vdwg.mxu0
  %356 = vmatprep.subr.mxu0 0.0
  %357 = vmatpush1.msra.mxu0 %v180
  %358 = vmatprep.subr.mxu0 0.0
  %359 = vmatpush1.msra.mxu0 %v183
  %360 = vmatprep.subr.mxu0 0.0
  %361 = vmatpush1.msra.mxu0 %v186
  %362 = vmatprep.subr.mxu0 0.0
  %363 = vmatpush1.msra.mxu0 %v189
  %364 = vmatprep.subr.mxu0 0.0
  %365 = vmatpush1.msra.mxu0 %v192
  %366 = vmatprep.subr.mxu0 0.0
  %367 = vmatpush1.msra.mxu0 %v195
  %368 = vmatprep.subr.mxu0 0.0
  %369 = vmatpush1.msra.mxu0 %v198
  %370 = vmatprep.subr.mxu0 0.0
  %371 = vmatpush1.msra.mxu0 %v201
  %372 = vmatprep.subr.mxu0 0.0
  %373 = vmatpush1.msra.mxu0 %v204
  %374 = vmatprep.subr.mxu0 0.0
  %375 = vmatpush1.msra.mxu0 %v207
  %376 = vmatprep.subr.mxu0 0.0
  %377 = vmatpush1.msra.mxu0 %v210
  %378 = vmatprep.subr.mxu0 0.0
  %379 = vmatpush1.msra.mxu0 %v213
  %380 = vmatprep.subr.mxu0 0.0
  %381 = vmatpush1.msra.mxu0 %v216
  %382 = vmatprep.subr.mxu0 0.0
  %383 = vmatpush1.msra.mxu0 %v219
  %384 = vmatprep.subr.mxu0 0.0
  %385 = vmatpush1.msra.mxu0 %v222
  %386 = vmatprep.subr.mxu0 0.0
  %387 = vmatpush1.msra.mxu0 %v225
  %388 = vmatprep.subr.mxu0 0.0
  %389 = vmatpush1.msra.mxu0 0.0
  %390 = vmatprep.subr.mxu0 0.0
  %391 = vmatpush1.msra.mxu0 0.0
  %392 = vmatprep.subr.mxu0 0.0
  %393 = vmatpush1.msra.mxu0 0.0
  %394 = vmatprep.subr.mxu0 0.0
  %395 = vmatpush1.msra.mxu0 0.0
  %396 = vmatprep.subr.mxu0 0.0
  %397 = vmatpush1.msra.mxu0 0.0
  %398 = vmatprep.subr.mxu0 0.0
  %399 = vmatpush1.msra.mxu0 0.0
  %400 = vmatprep.subr.mxu0 0.0
  %401 = vmatpush1.msra.mxu0 0.0
  %402 = vmatprep.subr.mxu0 0.0
  %403 = vmatpush1.msra.mxu0 0.0
  %404 = vmatprep.subr.mxu0 0.0
  %405 = vmatpush1.msra.mxu0 0.0
  %406 = vmatprep.subr.mxu0 0.0
  %407 = vmatpush1.msra.mxu0 0.0
  %408 = vmatprep.subr.mxu0 0.0
  %409 = vmatpush1.msra.mxu0 0.0
  %410 = vmatprep.subr.mxu0 0.0
  %411 = vmatpush1.msra.mxu0 0.0
  %412 = vmatprep.subr.mxu0 0.0
  %413 = vmatpush1.msra.mxu0 0.0
  %414 = vmatprep.subr.mxu0 0.0
  %415 = vmatpush1.msra.mxu0 0.0
  %416 = vmatprep.subr.mxu0 0.0
  %417 = vmatpush1.msra.mxu0 0.0
  %418 = vmatprep.subr.mxu0 0.0
  %419 = vmatpush1.msra.mxu0 0.0
  %420 = vmatprep.mubr.f32.mxu0 0.0
  %421 = vmatmul.mubr.f32.gmra.mrb[0].mxu0 %v170
  %v422 = vpop.f32.mrb[0].mxu0
  %v423 = vadd.f32 %v239, %v422
  %v424 = vpop.f32.mrb[0].mxu0
  %425 = vmatprep.mubr.f32.mxu0 0.0
  %426 = vmatmul.mubr.f32.gmra.mrb[0].mxu0 %v171
  %v427 = vpop.f32.mrb[0].mxu0
  %v428 = vadd.f32 %v239, %v427
  %v429 = vpop.f32.mrb[0].mxu0
  %430 = vmatprep.mubr.f32.mxu0 0.0
  %431 = vmatmul.mubr.f32.gmra.mrb[0].mxu0 %v172
  %v432 = vpop.f32.mrb[0].mxu0
  %v433 = vadd.f32 %v239, %v432
  %v434 = vpop.f32.mrb[0].mxu0
  %435 = vmatprep.mubr.f32.mxu0 0.0
  %436 = vmatmul.mubr.f32.gmra.mrb[0].mxu0 %v173
  %v437 = vpop.f32.mrb[0].mxu0
  %v438 = vadd.f32 %v239, %v437
  %v439 = vpop.f32.mrb[0].mxu0
  %440 = vmatprep.mubr.f32.mxu0 0.0
  %441 = vmatmul.mubr.f32.gmra.mrb[0].mxu0 %v174
  %v442 = vpop.f32.mrb[0].mxu0
  %v443 = vadd.f32 %v239, %v442
  %v444 = vpop.f32.mrb[0].mxu0
  %445 = vmatprep.mubr.f32.mxu0 0.0
  %446 = vmatmul.mubr.f32.gmra.mrb[0].mxu0 %v175
  %v447 = vpop.f32.mrb[0].mxu0
  %v448 = vadd.f32 %v239, %v447
  %v449 = vpop.f32.mrb[0].mxu0
  %450 = vmatprep.mubr.f32.mxu0 0.0
  %451 = vmatmul.mubr.f32.gmra.mrb[0].mxu0 %v176
  %v452 = vpop.f32.mrb[0].mxu0
  %v453 = vadd.f32 %v239, %v452
  %v454 = vpop.f32.mrb[0].mxu0
  %455 = vmatprep.mubr.f32.mxu0 0.0
  %456 = vmatmul.mubr.f32.gmra.mrb[0].mxu0 %v177
  %v457 = vpop.f32.mrb[0].mxu0
  %v458 = vadd.f32 %v239, %v457
  %v459 = vpop.f32.mrb[0].mxu0
  %460 = vdwg.mxu0
  %v461 = vld [vmem:[%s5] sm:$0xff]
  %v462 = vld [vmem:[%s5 + $0x8] sm:$0xff]
  %v463 = vld [vmem:[%s5 + $0x10] sm:$0xff]
  %v464 = vld [vmem:[%s5 + $0x18] sm:$0xff]
  %v465 = vld [vmem:[%s5 + $0x20] sm:$0xff]
  %v466 = vld [vmem:[%s5 + $0x28] sm:$0xff]
  %v467 = vld [vmem:[%s5 + $0x30] sm:$0xff]
  %v468 = vld [vmem:[%s5 + $0x38] sm:$0xff]
  %v469 = vld [vmem:[%s5 + $0x40] sm:$0xff]
  %v470 = vld [vmem:[%s5 + $0x48] sm:$0xff]
  %v471 = vld [vmem:[%s5 + $0x50] sm:$0xff]
  %v472 = vld [vmem:[%s5 + $0x58] sm:$0xff]
  %v473 = vld [vmem:[%s5 + $0x60] sm:$0xff]
  %v474 = vld [vmem:[%s5 + $0x68] sm:$0xff]
  %v475 = vld [vmem:[%s5 + $0x70] sm:$0xff]
  %v476 = vld [vmem:[%s5 + $0x78] sm:$0xff]
  %v477 = vld [vmem:[%s5 + $0x80] sm:$0xff]
  %v478 = vld [vmem:[%s5 + $0x88] sm:$0xff]
  %v479 = vld [vmem:[%s5 + $0x90] sm:$0xff]
  %v480 = vld [vmem:[%s5 + $0x98] sm:$0xff]
  %v481 = vld [vmem:[%s5 + $0xa0] sm:$0xff]
  %v482 = vld [vmem:[%s5 + $0xa8] sm:$0xff]
  %v483 = vld [vmem:[%s5 + $0xb0] sm:$0xff]
  %v484 = vld [vmem:[%s5 + $0xb8] sm:$0xff]
  %v485 = vld [vmem:[%s5 + $0xc0] sm:$0xff]
  %v486 = vld [vmem:[%s5 + $0xc8] sm:$0xff]
  %v487 = vld [vmem:[%s5 + $0xd0] sm:$0xff]
  %v488 = vld [vmem:[%s5 + $0xd8] sm:$0xff]
  %v489 = vld [vmem:[%s5 + $0xe0] sm:$0xff]
  %v490 = vld [vmem:[%s5 + $0xe8] sm:$0xff]
  %v491 = vld [vmem:[%s5 + $0xf0] sm:$0xff]
  %v492 = vld [vmem:[%s5 + $0xf8] sm:$0xff]
  %v493 = vld [vmem:[%s5 + $0x100] sm:$0xff]
  %v494 = vld [vmem:[%s5 + $0x108] sm:$0xff]
  %v495 = vld [vmem:[%s5 + $0x110] sm:$0xff]
  %v496 = vld [vmem:[%s5 + $0x118] sm:$0xff]
  %v497 = vld [vmem:[%s5 + $0x120] sm:$0xff]
  %v498 = vld [vmem:[%s5 + $0x128] sm:$0xff]
  %v499 = vld [vmem:[%s5 + $0x130] sm:$0xff]
  %v500 = vld [vmem:[%s5 + $0x138] sm:$0xff]
  %v501 = vld [vmem:[%s5 + $0x140] sm:$0xff]
  %v502 = vld [vmem:[%s5 + $0x148] sm:$0xff]
  %v503 = vld [vmem:[%s5 + $0x150] sm:$0xff]
  %v504 = vld [vmem:[%s5 + $0x158] sm:$0xff]
  %v505 = vld [vmem:[%s5 + $0x160] sm:$0xff]
  %v506 = vld [vmem:[%s5 + $0x168] sm:$0xff]
  %v507 = vld [vmem:[%s5 + $0x170] sm:$0xff]
  %v508 = vld [vmem:[%s5 + $0x178] sm:$0xff]
  %v509 = vld [vmem:[%s6] sm:$0x1]
  %v510 = vld [vmem:[%s7] sm:$0x1]
  %v511 = vld [vmem:[#allocation2] sm:$0x1]
  %512 = vmatprep.subr.mxu0 %v462
  %513 = vmatpush1.msra.mxu0 %v461
  %514 = vmatprep.subr.mxu0 %v465
  %515 = vmatpush1.msra.mxu0 %v464
  %516 = vmatprep.subr.mxu0 %v468
  %517 = vmatpush1.msra.mxu0 %v467
  %518 = vmatprep.subr.mxu0 %v471
  %519 = vmatpush1.msra.mxu0 %v470
  %520 = vmatprep.subr.mxu0 %v474
  %521 = vmatpush1.msra.mxu0 %v473
  %522 = vmatprep.subr.mxu0 %v477
  %523 = vmatpush1.msra.mxu0 %v476
  %524 = vmatprep.subr.mxu0 %v480
  %525 = vmatpush1.msra.mxu0 %v479
  %526 = vmatprep.subr.mxu0 %v483
  %527 = vmatpush1.msra.mxu0 %v482
  %528 = vmatprep.subr.mxu0 %v486
  %529 = vmatpush1.msra.mxu0 %v485
  %530 = vmatprep.subr.mxu0 %v489
  %531 = vmatpush1.msra.mxu0 %v488
  %532 = vmatprep.subr.mxu0 %v492
  %533 = vmatpush1.msra.mxu0 %v491
  %534 = vmatprep.subr.mxu0 %v495
  %535 = vmatpush1.msra.mxu0 %v494
  %536 = vmatprep.subr.mxu0 %v498
  %537 = vmatpush1.msra.mxu0 %v497
  %538 = vmatprep.subr.mxu0 %v501
  %539 = vmatpush1.msra.mxu0 %v500
  %540 = vmatprep.subr.mxu0 %v504
  %541 = vmatpush1.msra.mxu0 %v503
  %542 = vmatprep.subr.mxu0 %v507
  %543 = vmatpush1.msra.mxu0 %v506
  %544 = vmatprep.subr.mxu0 0.0
  %545 = vmatpush1.msra.mxu0 0.0
  %546 = vmatprep.subr.mxu0 0.0
  %547 = vmatpush1.msra.mxu0 0.0
  %548 = vmatprep.subr.mxu0 0.0
  %549 = vmatpush1.msra.mxu0 0.0
  %550 = vmatprep.subr.mxu0 0.0
  %551 = vmatpush1.msra.mxu0 0.0
  %552 = vmatprep.subr.mxu0 0.0
  %553 = vmatpush1.msra.mxu0 0.0
  %554 = vmatprep.subr.mxu0 0.0
  %555 = vmatpush1.msra.mxu0 0.0
  %556 = vmatprep.subr.mxu0 0.0
  %557 = vmatpush1.msra.mxu0 0.0
  %558 = vmatprep.subr.mxu0 0.0
  %559 = vmatpush1.msra.mxu0 0.0
  %560 = vmatprep.subr.mxu0 0.0
  %561 = vmatpush1.msra.mxu0 0.0
  %562 = vmatprep.subr.mxu0 0.0
  %563 = vmatpush1.msra.mxu0 0.0
  %564 = vmatprep.subr.mxu0 0.0
  %565 = vmatpush1.msra.mxu0 0.0
  %566 = vmatprep.subr.mxu0 0.0
  %567 = vmatpush1.msra.mxu0 0.0
  %568 = vmatprep.subr.mxu0 0.0
  %569 = vmatpush1.msra.mxu0 0.0
  %570 = vmatprep.subr.mxu0 0.0
  %571 = vmatpush1.msra.mxu0 0.0
  %572 = vmatprep.subr.mxu0 0.0
  %573 = vmatpush1.msra.mxu0 0.0
  %574 = vmatprep.subr.mxu0 0.0
  %575 = vmatpush1.msra.mxu0 0.0
  %576 = vmatprep.mubr.f32.mxu0 0.0
  %577 = vmatmul.mubr.f32.gmra.mrb[0].mxu0 0.0
  %v578 = vpop.f32.mrb[0].mxu0
  %v579 = vadd.f32 0.0, %v578
  %v580 = vpop.f32.mrb[0].mxu0
  %v581 = vadd.f32 0.0, %v580
  %582 = vdwg.mxu0
  %583 = vmatprep.subr.mxu0 0.0
  %584 = vmatpush1.msra.mxu0 %v463
  %585 = vmatprep.subr.mxu0 0.0
  %586 = vmatpush1.msra.mxu0 %v466
  %587 = vmatprep.subr.mxu0 0.0
  %588 = vmatpush1.msra.mxu0 %v469
  %589 = vmatprep.subr.mxu0 0.0
  %590 = vmatpush1.msra.mxu0 %v472
  %591 = vmatprep.subr.mxu0 0.0
  %592 = vmatpush1.msra.mxu0 %v475
  %593 = vmatprep.subr.mxu0 0.0
  %594 = vmatpush1.msra.mxu0 %v478
  %595 = vmatprep.subr.mxu0 0.0
  %596 = vmatpush1.msra.mxu0 %v481
  %597 = vmatprep.subr.mxu0 0.0
  %598 = vmatpush1.msra.mxu0 %v484
  %599 = vmatprep.subr.mxu0 0.0
  %600 = vmatpush1.msra.mxu0 %v487
  %601 = vmatprep.subr.mxu0 0.0
  %602 = vmatpush1.msra.mxu0 %v490
  %603 = vmatprep.subr.mxu0 0.0
  %604 = vmatpush1.msra.mxu0 %v493
  %605 = vmatprep.subr.mxu0 0.0
  %606 = vmatpush1.msra.mxu0 %v496
  %607 = vmatprep.subr.mxu0 0.0
  %608 = vmatpush1.msra.mxu0 %v499
  %609 = vmatprep.subr.mxu0 0.0
  %610 = vmatpush1.msra.mxu0 %v502
  %611 = vmatprep.subr.mxu0 0.0
  %612 = vmatpush1.msra.mxu0 %v505
  %613 = vmatprep.subr.mxu0 0.0
  %614 = vmatpush1.msra.mxu0 %v508
  %615 = vmatprep.subr.mxu0 0.0
  %616 = vmatpush1.msra.mxu0 0.0
  %617 = vmatprep.subr.mxu0 0.0
  %618 = vmatpush1.msra.mxu0 0.0
  %619 = vmatprep.subr.mxu0 0.0
  %620 = vmatpush1.msra.mxu0 0.0
  %621 = vmatprep.subr.mxu0 0.0
  %622 = vmatpush1.msra.mxu0 0.0
  %623 = vmatprep.subr.mxu0 0.0
  %624 = vmatpush1.msra.mxu0 0.0
  %625 = vmatprep.subr.mxu0 0.0
  %626 = vmatpush1.msra.mxu0 0.0
  %627 = vmatprep.subr.mxu0 0.0
  %628 = vmatpush1.msra.mxu0 0.0
  %629 = vmatprep.subr.mxu0 0.0
  %630 = vmatpush1.msra.mxu0 0.0
  %631 = vmatprep.subr.mxu0 0.0
  %632 = vmatpush1.msra.mxu0 0.0
  %633 = vmatprep.subr.mxu0 0.0
  %634 = vmatpush1.msra.mxu0 0.0
  %635 = vmatprep.subr.mxu0 0.0
  %636 = vmatpush1.msra.mxu0 0.0
  %637 = vmatprep.subr.mxu0 0.0
  %638 = vmatpush1.msra.mxu0 0.0
  %639 = vmatprep.subr.mxu0 0.0
  %640 = vmatpush1.msra.mxu0 0.0
  %641 = vmatprep.subr.mxu0 0.0
  %642 = vmatpush1.msra.mxu0 0.0
  %643 = vmatprep.subr.mxu0 0.0
  %644 = vmatpush1.msra.mxu0 0.0
  %645 = vmatprep.subr.mxu0 0.0
  %646 = vmatpush1.msra.mxu0 0.0
  %647 = vmatprep.mubr.f32.mxu0 0.0
  %648 = vmatmul.mubr.f32.gmra.mrb[0].mxu0 0.0
  %v649 = vpop.f32.mrb[0].mxu0
  %v650 = vadd.f32 0.0, %v649
  %v651 = vpop.f32.mrb[0].mxu0
  %652 = vdwg.mxu0
  %v653 = vadd.f32 %v310, %v579
  %v654 = vxor.u32 %v653, 2147483648
  %v655 = vmul.f32 %v654, 1.442695
  %v656 = vpow.pop %v655
  %v657 = vadd.f32 %v656, 1.0
  %v658 = vrcp.pop %v657
  %v659 = vmul.f32 1.0, %v658
  %v660 = vadd.f32 %v312, %v581
  %v661 = vxor.u32 %v660, 2147483648
  %v662 = vmul.f32 %v661, 1.442695
  %v663 = vpow.pop %v662
  %v664 = vadd.f32 %v663, 1.0
  %v665 = vrcp.pop %v664
  %v666 = vmul.f32 1.0, %v665
  %v668 = vlaneseq
  %v669 = vshrl.u32 %v668, 7
  %v670 = vsub.s32 0, %v669
  %v671 = vrot.slane %v509, %v670
  %v673 = vadd.f32 %v650, %v671
  %v674 = vmul.f32 %v659, %v673
  %v675 = vadd.f32 %v423, %v674
  %v676 = vtanh.pop %v675
  %v677 = vsub.f32 1.0, %v666
  %v678 = vmul.f32 %v677, %v676
  %v679 = vmul.f32 %v666, 0.0
  %v680 = vadd.f32 %v678, %v679
  %v682 = vlaneseq
  %v683 = vshrl.u32 %v682, 7
  %v684 = vsub.s32 0, %v683
  %v685 = vrot.slane %v510, %v684
  %v687 = vmul.f32 %v680, %v685
  %688 = vadd.xlane.f32.xlu0 %v687
  %v689 = vpop.xlane.xlu0 %688
  %691 = vset.pattern.permute.xlu0 0
  %692 = vperm.xlu0 %691, %v511
  %v693 = vpop.permute.xlu0 %692
  %v695 = vlaneseq
  %v696 = vshrl.u32 %v695, 7
  %v697 = vsub.s32 0, %v696
  %v698 = vrot.slane %v693, %v697
  %v699 = vadd.f32 %v689, %v698
  %v701 = vlaneseq
  %v702 = vand.u32 %v701, 127
  %v703 = vlaneseq
  %v704 = vshrl.u32 %v703, 7
  %v705 = vsub.s32 %v702, %v704
  %v706 = vrot.slane %v699, %v705
  %vm708 = vcmask 57344
  %709 = vst.msk [vmem:[%s9] sm:$0x1] %vm708, %v706
  %710 = vmatprep.subr.mxu0 %v462
  %711 = vmatpush1.msra.mxu0 %v461
  %712 = vmatprep.subr.mxu0 %v465
  %713 = vmatpush1.msra.mxu0 %v464
  %714 = vmatprep.subr.mxu0 %v468
  %715 = vmatpush1.msra.mxu0 %v467
  %716 = vmatprep.subr.mxu0 %v471
  %717 = vmatpush1.msra.mxu0 %v470
  %718 = vmatprep.subr.mxu0 %v474
  %719 = vmatpush1.msra.mxu0 %v473
  %720 = vmatprep.subr.mxu0 %v477
  %721 = vmatpush1.msra.mxu0 %v476
  %722 = vmatprep.subr.mxu0 %v480
  %723 = vmatpush1.msra.mxu0 %v479
  %724 = vmatprep.subr.mxu0 %v483
  %725 = vmatpush1.msra.mxu0 %v482
  %726 = vmatprep.subr.mxu0 %v486
  %727 = vmatpush1.msra.mxu0 %v485
  %728 = vmatprep.subr.mxu0 %v489
  %729 = vmatpush1.msra.mxu0 %v488
  %730 = vmatprep.subr.mxu0 %v492
  %731 = vmatpush1.msra.mxu0 %v491
  %732 = vmatprep.subr.mxu0 %v495
  %733 = vmatpush1.msra.mxu0 %v494
  %734 = vmatprep.subr.mxu0 %v498
  %735 = vmatpush1.msra.mxu0 %v497
  %736 = vmatprep.subr.mxu0 %v501
  %737 = vmatpush1.msra.mxu0 %v500
  %738 = vmatprep.subr.mxu0 %v504
  %739 = vmatpush1.msra.mxu0 %v503
  %740 = vmatprep.subr.mxu0 %v507
  %741 = vmatpush1.msra.mxu0 %v506
  %742 = vmatprep.subr.mxu0 0.0
  %743 = vmatpush1.msra.mxu0 0.0
  %744 = vmatprep.subr.mxu0 0.0
  %745 = vmatpush1.msra.mxu0 0.0
  %746 = vmatprep.subr.mxu0 0.0
  %747 = vmatpush1.msra.mxu0 0.0
  %748 = vmatprep.subr.mxu0 0.0
  %749 = vmatpush1.msra.mxu0 0.0
  %750 = vmatprep.subr.mxu0 0.0
  %751 = vmatpush1.msra.mxu0 0.0
  %752 = vmatprep.subr.mxu0 0.0
  %753 = vmatpush1.msra.mxu0 0.0
  %754 = vmatprep.subr.mxu0 0.0
  %755 = vmatpush1.msra.mxu0 0.0
  %756 = vmatprep.subr.mxu0 0.0
  %757 = vmatpush1.msra.mxu0 0.0
  %758 = vmatprep.subr.mxu0 0.0
  %759 = vmatpush1.msra.mxu0 0.0
  %760 = vmatprep.subr.mxu0 0.0
  %761 = vmatpush1.msra.mxu0 0.0
  %762 = vmatprep.subr.mxu0 0.0
  %763 = vmatpush1.msra.mxu0 0.0
  %764 = vmatprep.subr.mxu0 0.0
  %765 = vmatpush1.msra.mxu0 0.0
  %766 = vmatprep.subr.mxu0 0.0
  %767 = vmatpush1.msra.mxu0 0.0
  %768 = vmatprep.subr.mxu0 0.0
  %769 = vmatpush1.msra.mxu0 0.0
  %770 = vmatprep.subr.mxu0 0.0
  %771 = vmatpush1.msra.mxu0 0.0
  %772 = vmatprep.subr.mxu0 0.0
  %773 = vmatpush1.msra.mxu0 0.0
  %774 = vmatprep.mubr.f32.mxu0 0.0
  %775 = vmatmul.mubr.f32.gmra.mrb[0].mxu0 %v680
  %v776 = vpop.f32.mrb[0].mxu0
  %v777 = vadd.f32 0.0, %v776
  %v778 = vpop.f32.mrb[0].mxu0
  %v779 = vadd.f32 0.0, %v778
  %780 = vdwg.mxu0
  %781 = vmatprep.subr.mxu0 0.0
  %782 = vmatpush1.msra.mxu0 %v463
  %783 = vmatprep.subr.mxu0 0.0
  %784 = vmatpush1.msra.mxu0 %v466
  %785 = vmatprep.subr.mxu0 0.0
  %786 = vmatpush1.msra.mxu0 %v469
  %787 = vmatprep.subr.mxu0 0.0
  %788 = vmatpush1.msra.mxu0 %v472
  %789 = vmatprep.subr.mxu0 0.0
  %790 = vmatpush1.msra.mxu0 %v475
  %791 = vmatprep.subr.mxu0 0.0
  %792 = vmatpush1.msra.mxu0 %v478
  %793 = vmatprep.subr.mxu0 0.0
  %794 = vmatpush1.msra.mxu0 %v481
  %795 = vmatprep.subr.mxu0 0.0
  %796 = vmatpush1.msra.mxu0 %v484
  %797 = vmatprep.subr.mxu0 0.0
  %798 = vmatpush1.msra.mxu0 %v487
  %799 = vmatprep.subr.mxu0 0.0
  %800 = vmatpush1.msra.mxu0 %v490
  %801 = vmatprep.subr.mxu0 0.0
  %802 = vmatpush1.msra.mxu0 %v493
  %803 = vmatprep.subr.mxu0 0.0
  %804 = vmatpush1.msra.mxu0 %v496
  %805 = vmatprep.subr.mxu0 0.0
  %806 = vmatpush1.msra.mxu0 %v499
  %807 = vmatprep.subr.mxu0 0.0
  %808 = vmatpush1.msra.mxu0 %v502
  %809 = vmatprep.subr.mxu0 0.0
  %810 = vmatpush1.msra.mxu0 %v505
  %811 = vmatprep.subr.mxu0 0.0
  %812 = vmatpush1.msra.mxu0 %v508
  %813 = vmatprep.subr.mxu0 0.0
  %814 = vmatpush1.msra.mxu0 0.0
  %815 = vmatprep.subr.mxu0 0.0
  %816 = vmatpush1.msra.mxu0 0.0
  %817 = vmatprep.subr.mxu0 0.0
  %818 = vmatpush1.msra.mxu0 0.0
  %819 = vmatprep.subr.mxu0 0.0
  %820 = vmatpush1.msra.mxu0 0.0
  %821 = vmatprep.subr.mxu0 0.0
  %822 = vmatpush1.msra.mxu0 0.0
  %823 = vmatprep.subr.mxu0 0.0
  %824 = vmatpush1.msra.mxu0 0.0
  %825 = vmatprep.subr.mxu0 0.0
  %826 = vmatpush1.msra.mxu0 0.0
  %827 = vmatprep.subr.mxu0 0.0
  %828 = vmatpush1.msra.mxu0 0.0
  %829 = vmatprep.subr.mxu0 0.0
  %830 = vmatpush1.msra.mxu0 0.0
  %831 = vmatprep.subr.mxu0 0.0
  %832 = vmatpush1.msra.mxu0 0.0
  %833 = vmatprep.subr.mxu0 0.0
  %834 = vmatpush1.msra.mxu0 0.0
  %835 = vmatprep.subr.mxu0 0.0
  %836 = vmatpush1.msra.mxu0 0.0
  %837 = vmatprep.subr.mxu0 0.0
  %838 = vmatpush1.msra.mxu0 0.0
  %839 = vmatprep.subr.mxu0 0.0
  %840 = vmatpush1.msra.mxu0 0.0
  %841 = vmatprep.subr.mxu0 0.0
  %842 = vmatpush1.msra.mxu0 0.0
  %843 = vmatprep.subr.mxu0 0.0
  %844 = vmatpush1.msra.mxu0 0.0
  %845 = vmatprep.mubr.f32.mxu0 0.0
  %846 = vmatmul.mubr.f32.gmra.mrb[0].mxu0 %v680
  %v847 = vpop.f32.mrb[0].mxu0
  %v848 = vadd.f32 0.0, %v847
  %v849 = vpop.f32.mrb[0].mxu0
  %850 = vdwg.mxu0
  %v851 = vadd.f32 %v316, %v777
  %v852 = vxor.u32 %v851, 2147483648
  %v853 = vmul.f32 %v852, 1.442695
  %v854 = vpow.pop %v853
  %v855 = vadd.f32 %v854, 1.0
  %v856 = vrcp.pop %v855
  %v857 = vmul.f32 1.0, %v856
  %v858 = vadd.f32 %v318, %v779
  %v859 = vxor.u32 %v858, 2147483648
  %v860 = vmul.f32 %v859, 1.442695
  %v861 = vpow.pop %v860
  %v862 = vadd.f32 %v861, 1.0
  %v863 = vrcp.pop %v862
  %v864 = vmul.f32 1.0, %v863
  %v865 = vadd.f32 %v848, %v671
  %v866 = vmul.f32 %v857, %v865
  %v867 = vadd.f32 %v428, %v866
  %v868 = vtanh.pop %v867
  %v869 = vsub.f32 1.0, %v864
  %v870 = vmul.f32 %v869, %v868
  %v871 = vmul.f32 %v864, %v680
  %v872 = vadd.f32 %v870, %v871
  %v873 = vmul.f32 %v872, %v685
  %874 = vadd.xlane.f32.xlu0 %v873
  %v875 = vpop.xlane.xlu0 %874
  %v876 = vadd.f32 %v875, %v698
  %v878 = vlaneseq
  %v879 = vshrl.u32 %v878, 7
  %v880 = vsub.s32 %v702, %v879
  %v881 = vrot.slane %v876, %v880
  %883 = vst.msk [vmem:[%s9 + $0x1] sm:$0x1] %vm708, %v881
  %884 = vmatprep.subr.mxu0 %v462
  %885 = vmatpush1.msra.mxu0 %v461
  %886 = vmatprep.subr.mxu0 %v465
  %887 = vmatpush1.msra.mxu0 %v464
  %888 = vmatprep.subr.mxu0 %v468
  %889 = vmatpush1.msra.mxu0 %v467
  %890 = vmatprep.subr.mxu0 %v471
  %891 = vmatpush1.msra.mxu0 %v470
  %892 = vmatprep.subr.mxu0 %v474
  %893 = vmatpush1.msra.mxu0 %v473
  %894 = vmatprep.subr.mxu0 %v477
  %895 = vmatpush1.msra.mxu0 %v476
  %896 = vmatprep.subr.mxu0 %v480
  %897 = vmatpush1.msra.mxu0 %v479
  %898 = vmatprep.subr.mxu0 %v483
  %899 = vmatpush1.msra.mxu0 %v482
  %900 = vmatprep.subr.mxu0 %v486
  %901 = vmatpush1.msra.mxu0 %v485
  %902 = vmatprep.subr.mxu0 %v489
  %903 = vmatpush1.msra.mxu0 %v488
  %904 = vmatprep.subr.mxu0 %v492
  %905 = vmatpush1.msra.mxu0 %v491
  %906 = vmatprep.subr.mxu0 %v495
  %907 = vmatpush1.msra.mxu0 %v494
  %908 = vmatprep.subr.mxu0 %v498
  %909 = vmatpush1.msra.mxu0 %v497
  %910 = vmatprep.subr.mxu0 %v501
  %911 = vmatpush1.msra.mxu0 %v500
  %912 = vmatprep.subr.mxu0 %v504
  %913 = vmatpush1.msra.mxu0 %v503
  %914 = vmatprep.subr.mxu0 %v507
  %915 = vmatpush1.msra.mxu0 %v506
  %916 = vmatprep.subr.mxu0 0.0
  %917 = vmatpush1.msra.mxu0 0.0
  %918 = vmatprep.subr.mxu0 0.0
  %919 = vmatpush1.msra.mxu0 0.0
  %920 = vmatprep.subr.mxu0 0.0
  %921 = vmatpush1.msra.mxu0 0.0
  %922 = vmatprep.subr.mxu0 0.0
  %923 = vmatpush1.msra.mxu0 0.0
  %924 = vmatprep.subr.mxu0 0.0
  %925 = vmatpush1.msra.mxu0 0.0
  %926 = vmatprep.subr.mxu0 0.0
  %927 = vmatpush1.msra.mxu0 0.0
  %928 = vmatprep.subr.mxu0 0.0
  %929 = vmatpush1.msra.mxu0 0.0
  %930 = vmatprep.subr.mxu0 0.0
  %931 = vmatpush1.msra.mxu0 0.0
  %932 = vmatprep.subr.mxu0 0.0
  %933 = vmatpush1.msra.mxu0 0.0
  %934 = vmatprep.subr.mxu0 0.0
  %935 = vmatpush1.msra.mxu0 0.0
  %936 = vmatprep.subr.mxu0 0.0
  %937 = vmatpush1.msra.mxu0 0.0
  %938 = vmatprep.subr.mxu0 0.0
  %939 = vmatpush1.msra.mxu0 0.0
  %940 = vmatprep.subr.mxu0 0.0
  %941 = vmatpush1.msra.mxu0 0.0
  %942 = vmatprep.subr.mxu0 0.0
  %943 = vmatpush1.msra.mxu0 0.0
  %944 = vmatprep.subr.mxu0 0.0
  %945 = vmatpush1.msra.mxu0 0.0
  %946 = vmatprep.subr.mxu0 0.0
  %947 = vmatpush1.msra.mxu0 0.0
  %948 = vmatprep.mubr.f32.mxu0 0.0
  %949 = vmatmul.mubr.f32.gmra.mrb[0].mxu0 %v872
  %v950 = vpop.f32.mrb[0].mxu0
  %v951 = vadd.f32 0.0, %v950
  %v952 = vpop.f32.mrb[0].mxu0
  %v953 = vadd.f32 0.0, %v952
  %954 = vdwg.mxu0
  %955 = vmatprep.subr.mxu0 0.0
  %956 = vmatpush1.msra.mxu0 %v463
  %957 = vmatprep.subr.mxu0 0.0
  %958 = vmatpush1.msra.mxu0 %v466
  %959 = vmatprep.subr.mxu0 0.0
  %960 = vmatpush1.msra.mxu0 %v469
  %961 = vmatprep.subr.mxu0 0.0
  %962 = vmatpush1.msra.mxu0 %v472
  %963 = vmatprep.subr.mxu0 0.0
  %964 = vmatpush1.msra.mxu0 %v475
  %965 = vmatprep.subr.mxu0 0.0
  %966 = vmatpush1.msra.mxu0 %v478
  %967 = vmatprep.subr.mxu0 0.0
  %968 = vmatpush1.msra.mxu0 %v481
  %969 = vmatprep.subr.mxu0 0.0
  %970 = vmatpush1.msra.mxu0 %v484
  %971 = vmatprep.subr.mxu0 0.0
  %972 = vmatpush1.msra.mxu0 %v487
  %973 = vmatprep.subr.mxu0 0.0
  %974 = vmatpush1.msra.mxu0 %v490
  %975 = vmatprep.subr.mxu0 0.0
  %976 = vmatpush1.msra.mxu0 %v493
  %977 = vmatprep.subr.mxu0 0.0
  %978 = vmatpush1.msra.mxu0 %v496
  %979 = vmatprep.subr.mxu0 0.0
  %980 = vmatpush1.msra.mxu0 %v499
  %981 = vmatprep.subr.mxu0 0.0
  %982 = vmatpush1.msra.mxu0 %v502
  %983 = vmatprep.subr.mxu0 0.0
  %984 = vmatpush1.msra.mxu0 %v505
  %985 = vmatprep.subr.mxu0 0.0
  %986 = vmatpush1.msra.mxu0 %v508
  %987 = vmatprep.subr.mxu0 0.0
  %988 = vmatpush1.msra.mxu0 0.0
  %989 = vmatprep.subr.mxu0 0.0
  %990 = vmatpush1.msra.mxu0 0.0
  %991 = vmatprep.subr.mxu0 0.0
  %992 = vmatpush1.msra.mxu0 0.0
  %993 = vmatprep.subr.mxu0 0.0
  %994 = vmatpush1.msra.mxu0 0.0
  %995 = vmatprep.subr.mxu0 0.0
  %996 = vmatpush1.msra.mxu0 0.0
  %997 = vmatprep.subr.mxu0 0.0
  %998 = vmatpush1.msra.mxu0 0.0
  %999 = vmatprep.subr.mxu0 0.0
  %1000 = vmatpush1.msra.mxu0 0.0
  %1001 = vmatprep.subr.mxu0 0.0
  %1002 = vmatpush1.msra.mxu0 0.0
  %1003 = vmatprep.subr.mxu0 0.0
  %1004 = vmatpush1.msra.mxu0 0.0
  %1005 = vmatprep.subr.mxu0 0.0
  %1006 = vmatpush1.msra.mxu0 0.0
  %1007 = vmatprep.subr.mxu0 0.0
  %1008 = vmatpush1.msra.mxu0 0.0
  %1009 = vmatprep.subr.mxu0 0.0
  %1010 = vmatpush1.msra.mxu0 0.0
  %1011 = vmatprep.subr.mxu0 0.0
  %1012 = vmatpush1.msra.mxu0 0.0
  %1013 = vmatprep.subr.mxu0 0.0
  %1014 = vmatpush1.msra.mxu0 0.0
  %1015 = vmatprep.subr.mxu0 0.0
  %1016 = vmatpush1.msra.mxu0 0.0
  %1017 = vmatprep.subr.mxu0 0.0
  %1018 = vmatpush1.msra.mxu0 0.0
  %1019 = vmatprep.mubr.f32.mxu0 0.0
  %1020 = vmatmul.mubr.f32.gmra.mrb[0].mxu0 %v872
  %v1021 = vpop.f32.mrb[0].mxu0
  %v1022 = vadd.f32 0.0, %v1021
  %v1023 = vpop.f32.mrb[0].mxu0
  %1024 = vdwg.mxu0
  %v1025 = vadd.f32 %v322, %v951
  %v1026 = vxor.u32 %v1025, 2147483648
  %v1027 = vmul.f32 %v1026, 1.442695
  %v1028 = vpow.pop %v1027
  %v1029 = vadd.f32 %v1028, 1.0
  %v1030 = vrcp.pop %v1029
  %v1031 = vmul.f32 1.0, %v1030
  %v1032 = vadd.f32 %v324, %v953
  %v1033 = vxor.u32 %v1032, 2147483648
  %v1034 = vmul.f32 %v1033, 1.442695
  %v1035 = vpow.pop %v1034
  %v1036 = vadd.f32 %v1035, 1.0
  %v1037 = vrcp.pop %v1036
  %v1038 = vmul.f32 1.0, %v1037
  %v1039 = vadd.f32 %v1022, %v671
  %v1040 = vmul.f32 %v1031, %v1039
  %v1041 = vadd.f32 %v433, %v1040
  %v1042 = vtanh.pop %v1041
  %v1043 = vsub.f32 1.0, %v1038
  %v1044 = vmul.f32 %v1043, %v1042
  %v1045 = vmul.f32 %v1038, %v872
  %v1046 = vadd.f32 %v1044, %v1045
  %v1047 = vmul.f32 %v1046, %v685
  %1048 = vadd.xlane.f32.xlu0 %v1047
  %v1049 = vpop.xlane.xlu0 %1048
  %v1050 = vadd.f32 %v1049, %v698
  %v1052 = vlaneseq
  %v1053 = vshrl.u32 %v1052, 7
  %v1054 = vsub.s32 %v702, %v1053
  %v1055 = vrot.slane %v1050, %v1054
  %1057 = vst.msk [vmem:[%s9 + $0x2] sm:$0x1] %vm708, %v1055
  %1058 = vmatprep.subr.mxu0 %v462
  %1059 = vmatpush1.msra.mxu0 %v461
  %1060 = vmatprep.subr.mxu0 %v465
  %1061 = vmatpush1.msra.mxu0 %v464
  %1062 = vmatprep.subr.mxu0 %v468
  %1063 = vmatpush1.msra.mxu0 %v467
  %1064 = vmatprep.subr.mxu0 %v471
  %1065 = vmatpush1.msra.mxu0 %v470
  %1066 = vmatprep.subr.mxu0 %v474
  %1067 = vmatpush1.msra.mxu0 %v473
  %1068 = vmatprep.subr.mxu0 %v477
  %1069 = vmatpush1.msra.mxu0 %v476
  %1070 = vmatprep.subr.mxu0 %v480
  %1071 = vmatpush1.msra.mxu0 %v479
  %1072 = vmatprep.subr.mxu0 %v483
  %1073 = vmatpush1.msra.mxu0 %v482
  %1074 = vmatprep.subr.mxu0 %v486
  %1075 = vmatpush1.msra.mxu0 %v485
  %1076 = vmatprep.subr.mxu0 %v489
  %1077 = vmatpush1.msra.mxu0 %v488
  %1078 = vmatprep.subr.mxu0 %v492
  %1079 = vmatpush1.msra.mxu0 %v491
  %1080 = vmatprep.subr.mxu0 %v495
  %1081 = vmatpush1.msra.mxu0 %v494
  %1082 = vmatprep.subr.mxu0 %v498
  %1083 = vmatpush1.msra.mxu0 %v497
  %1084 = vmatprep.subr.mxu0 %v501
  %1085 = vmatpush1.msra.mxu0 %v500
  %1086 = vmatprep.subr.mxu0 %v504
  %1087 = vmatpush1.msra.mxu0 %v503
  %1088 = vmatprep.subr.mxu0 %v507
  %1089 = vmatpush1.msra.mxu0 %v506
  %1090 = vmatprep.subr.mxu0 0.0
  %1091 = vmatpush1.msra.mxu0 0.0
  %1092 = vmatprep.subr.mxu0 0.0
  %1093 = vmatpush1.msra.mxu0 0.0
  %1094 = vmatprep.subr.mxu0 0.0
  %1095 = vmatpush1.msra.mxu0 0.0
  %1096 = vmatprep.subr.mxu0 0.0
  %1097 = vmatpush1.msra.mxu0 0.0
  %1098 = vmatprep.subr.mxu0 0.0
  %1099 = vmatpush1.msra.mxu0 0.0
  %1100 = vmatprep.subr.mxu0 0.0
  %1101 = vmatpush1.msra.mxu0 0.0
  %1102 = vmatprep.subr.mxu0 0.0
  %1103 = vmatpush1.msra.mxu0 0.0
  %1104 = vmatprep.subr.mxu0 0.0
  %1105 = vmatpush1.msra.mxu0 0.0
  %1106 = vmatprep.subr.mxu0 0.0
  %1107 = vmatpush1.msra.mxu0 0.0
  %1108 = vmatprep.subr.mxu0 0.0
  %1109 = vmatpush1.msra.mxu0 0.0
  %1110 = vmatprep.subr.mxu0 0.0
  %1111 = vmatpush1.msra.mxu0 0.0
  %1112 = vmatprep.subr.mxu0 0.0
  %1113 = vmatpush1.msra.mxu0 0.0
  %1114 = vmatprep.subr.mxu0 0.0
  %1115 = vmatpush1.msra.mxu0 0.0
  %1116 = vmatprep.subr.mxu0 0.0
  %1117 = vmatpush1.msra.mxu0 0.0
  %1118 = vmatprep.subr.mxu0 0.0
  %1119 = vmatpush1.msra.mxu0 0.0
  %1120 = vmatprep.subr.mxu0 0.0
  %1121 = vmatpush1.msra.mxu0 0.0
  %1122 = vmatprep.mubr.f32.mxu0 0.0
  %1123 = vmatmul.mubr.f32.gmra.mrb[0].mxu0 %v1046
  %v1124 = vpop.f32.mrb[0].mxu0
  %v1125 = vadd.f32 0.0, %v1124
  %v1126 = vpop.f32.mrb[0].mxu0
  %v1127 = vadd.f32 0.0, %v1126
  %1128 = vdwg.mxu0
  %1129 = vmatprep.subr.mxu0 0.0
  %1130 = vmatpush1.msra.mxu0 %v463
  %1131 = vmatprep.subr.mxu0 0.0
  %1132 = vmatpush1.msra.mxu0 %v466
  %1133 = vmatprep.subr.mxu0 0.0
  %1134 = vmatpush1.msra.mxu0 %v469
  %1135 = vmatprep.subr.mxu0 0.0
  %1136 = vmatpush1.msra.mxu0 %v472
  %1137 = vmatprep.subr.mxu0 0.0
  %1138 = vmatpush1.msra.mxu0 %v475
  %1139 = vmatprep.subr.mxu0 0.0
  %1140 = vmatpush1.msra.mxu0 %v478
  %1141 = vmatprep.subr.mxu0 0.0
  %1142 = vmatpush1.msra.mxu0 %v481
  %1143 = vmatprep.subr.mxu0 0.0
  %1144 = vmatpush1.msra.mxu0 %v484
  %1145 = vmatprep.subr.mxu0 0.0
  %1146 = vmatpush1.msra.mxu0 %v487
  %1147 = vmatprep.subr.mxu0 0.0
  %1148 = vmatpush1.msra.mxu0 %v490
  %1149 = vmatprep.subr.mxu0 0.0
  %1150 = vmatpush1.msra.mxu0 %v493
  %1151 = vmatprep.subr.mxu0 0.0
  %1152 = vmatpush1.msra.mxu0 %v496
  %1153 = vmatprep.subr.mxu0 0.0
  %1154 = vmatpush1.msra.mxu0 %v499
  %1155 = vmatprep.subr.mxu0 0.0
  %1156 = vmatpush1.msra.mxu0 %v502
  %1157 = vmatprep.subr.mxu0 0.0
  %1158 = vmatpush1.msra.mxu0 %v505
  %1159 = vmatprep.subr.mxu0 0.0
  %1160 = vmatpush1.msra.mxu0 %v508
  %1161 = vmatprep.subr.mxu0 0.0
  %1162 = vmatpush1.msra.mxu0 0.0
  %1163 = vmatprep.subr.mxu0 0.0
  %1164 = vmatpush1.msra.mxu0 0.0
  %1165 = vmatprep.subr.mxu0 0.0
  %1166 = vmatpush1.msra.mxu0 0.0
  %1167 = vmatprep.subr.mxu0 0.0
  %1168 = vmatpush1.msra.mxu0 0.0
  %1169 = vmatprep.subr.mxu0 0.0
  %1170 = vmatpush1.msra.mxu0 0.0
  %1171 = vmatprep.subr.mxu0 0.0
  %1172 = vmatpush1.msra.mxu0 0.0
  %1173 = vmatprep.subr.mxu0 0.0
  %1174 = vmatpush1.msra.mxu0 0.0
  %1175 = vmatprep.subr.mxu0 0.0
  %1176 = vmatpush1.msra.mxu0 0.0
  %1177 = vmatprep.subr.mxu0 0.0
  %1178 = vmatpush1.msra.mxu0 0.0
  %1179 = vmatprep.subr.mxu0 0.0
  %1180 = vmatpush1.msra.mxu0 0.0
  %1181 = vmatprep.subr.mxu0 0.0
  %1182 = vmatpush1.msra.mxu0 0.0
  %1183 = vmatprep.subr.mxu0 0.0
  %1184 = vmatpush1.msra.mxu0 0.0
  %1185 = vmatprep.subr.mxu0 0.0
  %1186 = vmatpush1.msra.mxu0 0.0
  %1187 = vmatprep.subr.mxu0 0.0
  %1188 = vmatpush1.msra.mxu0 0.0
  %1189 = vmatprep.subr.mxu0 0.0
  %1190 = vmatpush1.msra.mxu0 0.0
  %1191 = vmatprep.subr.mxu0 0.0
  %1192 = vmatpush1.msra.mxu0 0.0
  %1193 = vmatprep.mubr.f32.mxu0 0.0
  %1194 = vmatmul.mubr.f32.gmra.mrb[0].mxu0 %v1046
  %v1195 = vpop.f32.mrb[0].mxu0
  %v1196 = vadd.f32 0.0, %v1195
  %v1197 = vpop.f32.mrb[0].mxu0
  %1198 = vdwg.mxu0
  %v1199 = vadd.f32 %v328, %v1125
  %v1200 = vxor.u32 %v1199, 2147483648
  %v1201 = vmul.f32 %v1200, 1.442695
  %v1202 = vpow.pop %v1201
  %v1203 = vadd.f32 %v1202, 1.0
  %v1204 = vrcp.pop %v1203
  %v1205 = vmul.f32 1.0, %v1204
  %v1206 = vadd.f32 %v330, %v1127
  %v1207 = vxor.u32 %v1206, 2147483648
  %v1208 = vmul.f32 %v1207, 1.442695
  %v1209 = vpow.pop %v1208
  %v1210 = vadd.f32 %v1209, 1.0
  %v1211 = vrcp.pop %v1210
  %v1212 = vmul.f32 1.0, %v1211
  %v1213 = vadd.f32 %v1196, %v671
  %v1214 = vmul.f32 %v1205, %v1213
  %v1215 = vadd.f32 %v438, %v1214
  %v1216 = vtanh.pop %v1215
  %v1217 = vsub.f32 1.0, %v1212
  %v1218 = vmul.f32 %v1217, %v1216
  %v1219 = vmul.f32 %v1212, %v1046
  %v1220 = vadd.f32 %v1218, %v1219
  %v1221 = vmul.f32 %v1220, %v685
  %1222 = vadd.xlane.f32.xlu0 %v1221
  %v1223 = vpop.xlane.xlu0 %1222
  %v1224 = vadd.f32 %v1223, %v698
  %v1226 = vlaneseq
  %v1227 = vshrl.u32 %v1226, 7
  %v1228 = vsub.s32 %v702, %v1227
  %v1229 = vrot.slane %v1224, %v1228
  %1231 = vst.msk [vmem:[%s9 + $0x3] sm:$0x1] %vm708, %v1229
  %1232 = vmatprep.subr.mxu0 %v462
  %1233 = vmatpush1.msra.mxu0 %v461
  %1234 = vmatprep.subr.mxu0 %v465
  %1235 = vmatpush1.msra.mxu0 %v464
  %1236 = vmatprep.subr.mxu0 %v468
  %1237 = vmatpush1.msra.mxu0 %v467
  %1238 = vmatprep.subr.mxu0 %v471
  %1239 = vmatpush1.msra.mxu0 %v470
  %1240 = vmatprep.subr.mxu0 %v474
  %1241 = vmatpush1.msra.mxu0 %v473
  %1242 = vmatprep.subr.mxu0 %v477
  %1243 = vmatpush1.msra.mxu0 %v476
  %1244 = vmatprep.subr.mxu0 %v480
  %1245 = vmatpush1.msra.mxu0 %v479
  %1246 = vmatprep.subr.mxu0 %v483
  %1247 = vmatpush1.msra.mxu0 %v482
  %1248 = vmatprep.subr.mxu0 %v486
  %1249 = vmatpush1.msra.mxu0 %v485
  %1250 = vmatprep.subr.mxu0 %v489
  %1251 = vmatpush1.msra.mxu0 %v488
  %1252 = vmatprep.subr.mxu0 %v492
  %1253 = vmatpush1.msra.mxu0 %v491
  %1254 = vmatprep.subr.mxu0 %v495
  %1255 = vmatpush1.msra.mxu0 %v494
  %1256 = vmatprep.subr.mxu0 %v498
  %1257 = vmatpush1.msra.mxu0 %v497
  %1258 = vmatprep.subr.mxu0 %v501
  %1259 = vmatpush1.msra.mxu0 %v500
  %1260 = vmatprep.subr.mxu0 %v504
  %1261 = vmatpush1.msra.mxu0 %v503
  %1262 = vmatprep.subr.mxu0 %v507
  %1263 = vmatpush1.msra.mxu0 %v506
  %1264 = vmatprep.subr.mxu0 0.0
  %1265 = vmatpush1.msra.mxu0 0.0
  %1266 = vmatprep.subr.mxu0 0.0
  %1267 = vmatpush1.msra.mxu0 0.0
  %1268 = vmatprep.subr.mxu0 0.0
  %1269 = vmatpush1.msra.mxu0 0.0
  %1270 = vmatprep.subr.mxu0 0.0
  %1271 = vmatpush1.msra.mxu0 0.0
  %1272 = vmatprep.subr.mxu0 0.0
  %1273 = vmatpush1.msra.mxu0 0.0
  %1274 = vmatprep.subr.mxu0 0.0
  %1275 = vmatpush1.msra.mxu0 0.0
  %1276 = vmatprep.subr.mxu0 0.0
  %1277 = vmatpush1.msra.mxu0 0.0
  %1278 = vmatprep.subr.mxu0 0.0
  %1279 = vmatpush1.msra.mxu0 0.0
  %1280 = vmatprep.subr.mxu0 0.0
  %1281 = vmatpush1.msra.mxu0 0.0
  %1282 = vmatprep.subr.mxu0 0.0
  %1283 = vmatpush1.msra.mxu0 0.0
  %1284 = vmatprep.subr.mxu0 0.0
  %1285 = vmatpush1.msra.mxu0 0.0
  %1286 = vmatprep.subr.mxu0 0.0
  %1287 = vmatpush1.msra.mxu0 0.0
  %1288 = vmatprep.subr.mxu0 0.0
  %1289 = vmatpush1.msra.mxu0 0.0
  %1290 = vmatprep.subr.mxu0 0.0
  %1291 = vmatpush1.msra.mxu0 0.0
  %1292 = vmatprep.subr.mxu0 0.0
  %1293 = vmatpush1.msra.mxu0 0.0
  %1294 = vmatprep.subr.mxu0 0.0
  %1295 = vmatpush1.msra.mxu0 0.0
  %1296 = vmatprep.mubr.f32.mxu0 0.0
  %1297 = vmatmul.mubr.f32.gmra.mrb[0].mxu0 %v1220
  %v1298 = vpop.f32.mrb[0].mxu0
  %v1299 = vadd.f32 0.0, %v1298
  %v1300 = vpop.f32.mrb[0].mxu0
  %v1301 = vadd.f32 0.0, %v1300
  %1302 = vdwg.mxu0
  %1303 = vmatprep.subr.mxu0 0.0
  %1304 = vmatpush1.msra.mxu0 %v463
  %1305 = vmatprep.subr.mxu0 0.0
  %1306 = vmatpush1.msra.mxu0 %v466
  %1307 = vmatprep.subr.mxu0 0.0
  %1308 = vmatpush1.msra.mxu0 %v469
  %1309 = vmatprep.subr.mxu0 0.0
  %1310 = vmatpush1.msra.mxu0 %v472
  %1311 = vmatprep.subr.mxu0 0.0
  %1312 = vmatpush1.msra.mxu0 %v475
  %1313 = vmatprep.subr.mxu0 0.0
  %1314 = vmatpush1.msra.mxu0 %v478
  %1315 = vmatprep.subr.mxu0 0.0
  %1316 = vmatpush1.msra.mxu0 %v481
  %1317 = vmatprep.subr.mxu0 0.0
  %1318 = vmatpush1.msra.mxu0 %v484
  %1319 = vmatprep.subr.mxu0 0.0
  %1320 = vmatpush1.msra.mxu0 %v487
  %1321 = vmatprep.subr.mxu0 0.0
  %1322 = vmatpush1.msra.mxu0 %v490
  %1323 = vmatprep.subr.mxu0 0.0
  %1324 = vmatpush1.msra.mxu0 %v493
  %1325 = vmatprep.subr.mxu0 0.0
  %1326 = vmatpush1.msra.mxu0 %v496
  %1327 = vmatprep.subr.mxu0 0.0
  %1328 = vmatpush1.msra.mxu0 %v499
  %1329 = vmatprep.subr.mxu0 0.0
  %1330 = vmatpush1.msra.mxu0 %v502
  %1331 = vmatprep.subr.mxu0 0.0
  %1332 = vmatpush1.msra.mxu0 %v505
  %1333 = vmatprep.subr.mxu0 0.0
  %1334 = vmatpush1.msra.mxu0 %v508
  %1335 = vmatprep.subr.mxu0 0.0
  %1336 = vmatpush1.msra.mxu0 0.0
  %1337 = vmatprep.subr.mxu0 0.0
  %1338 = vmatpush1.msra.mxu0 0.0
  %1339 = vmatprep.subr.mxu0 0.0
  %1340 = vmatpush1.msra.mxu0 0.0
  %1341 = vmatprep.subr.mxu0 0.0
  %1342 = vmatpush1.msra.mxu0 0.0
  %1343 = vmatprep.subr.mxu0 0.0
  %1344 = vmatpush1.msra.mxu0 0.0
  %1345 = vmatprep.subr.mxu0 0.0
  %1346 = vmatpush1.msra.mxu0 0.0
  %1347 = vmatprep.subr.mxu0 0.0
  %1348 = vmatpush1.msra.mxu0 0.0
  %1349 = vmatprep.subr.mxu0 0.0
  %1350 = vmatpush1.msra.mxu0 0.0
  %1351 = vmatprep.subr.mxu0 0.0
  %1352 = vmatpush1.msra.mxu0 0.0
  %1353 = vmatprep.subr.mxu0 0.0
  %1354 = vmatpush1.msra.mxu0 0.0
  %1355 = vmatprep.subr.mxu0 0.0
  %1356 = vmatpush1.msra.mxu0 0.0
  %1357 = vmatprep.subr.mxu0 0.0
  %1358 = vmatpush1.msra.mxu0 0.0
  %1359 = vmatprep.subr.mxu0 0.0
  %1360 = vmatpush1.msra.mxu0 0.0
  %1361 = vmatprep.subr.mxu0 0.0
  %1362 = vmatpush1.msra.mxu0 0.0
  %1363 = vmatprep.subr.mxu0 0.0
  %1364 = vmatpush1.msra.mxu0 0.0
  %1365 = vmatprep.subr.mxu0 0.0
  %1366 = vmatpush1.msra.mxu0 0.0
  %1367 = vmatprep.mubr.f32.mxu0 0.0
  %1368 = vmatmul.mubr.f32.gmra.mrb[0].mxu0 %v1220
  %v1369 = vpop.f32.mrb[0].mxu0
  %v1370 = vadd.f32 0.0, %v1369
  %v1371 = vpop.f32.mrb[0].mxu0
  %1372 = vdwg.mxu0
  %v1373 = vadd.f32 %v334, %v1299
  %v1374 = vxor.u32 %v1373, 2147483648
  %v1375 = vmul.f32 %v1374, 1.442695
  %v1376 = vpow.pop %v1375
  %v1377 = vadd.f32 %v1376, 1.0
  %v1378 = vrcp.pop %v1377
  %v1379 = vmul.f32 1.0, %v1378
  %v1380 = vadd.f32 %v336, %v1301
  %v1381 = vxor.u32 %v1380, 2147483648
  %v1382 = vmul.f32 %v1381, 1.442695
  %v1383 = vpow.pop %v1382
  %v1384 = vadd.f32 %v1383, 1.0
  %v1385 = vrcp.pop %v1384
  %v1386 = vmul.f32 1.0, %v1385
  %v1387 = vadd.f32 %v1370, %v671
  %v1388 = vmul.f32 %v1379, %v1387
  %v1389 = vadd.f32 %v443, %v1388
  %v1390 = vtanh.pop %v1389
  %v1391 = vsub.f32 1.0, %v1386
  %v1392 = vmul.f32 %v1391, %v1390
  %v1393 = vmul.f32 %v1386, %v1220
  %v1394 = vadd.f32 %v1392, %v1393
  %v1395 = vmul.f32 %v1394, %v685
  %1396 = vadd.xlane.f32.xlu0 %v1395
  %v1397 = vpop.xlane.xlu0 %1396
  %v1398 = vadd.f32 %v1397, %v698
  %v1400 = vlaneseq
  %v1401 = vshrl.u32 %v1400, 7
  %v1402 = vsub.s32 %v702, %v1401
  %v1403 = vrot.slane %v1398, %v1402
  %1405 = vst.msk [vmem:[%s9 + $0x4] sm:$0x1] %vm708, %v1403
  %1406 = vmatprep.subr.mxu0 %v462
  %1407 = vmatpush1.msra.mxu0 %v461
  %1408 = vmatprep.subr.mxu0 %v465
  %1409 = vmatpush1.msra.mxu0 %v464
  %1410 = vmatprep.subr.mxu0 %v468
  %1411 = vmatpush1.msra.mxu0 %v467
  %1412 = vmatprep.subr.mxu0 %v471
  %1413 = vmatpush1.msra.mxu0 %v470
  %1414 = vmatprep.subr.mxu0 %v474
  %1415 = vmatpush1.msra.mxu0 %v473
  %1416 = vmatprep.subr.mxu0 %v477
  %1417 = vmatpush1.msra.mxu0 %v476
  %1418 = vmatprep.subr.mxu0 %v480
  %1419 = vmatpush1.msra.mxu0 %v479
  %1420 = vmatprep.subr.mxu0 %v483
  %1421 = vmatpush1.msra.mxu0 %v482
  %1422 = vmatprep.subr.mxu0 %v486
  %1423 = vmatpush1.msra.mxu0 %v485
  %1424 = vmatprep.subr.mxu0 %v489
  %1425 = vmatpush1.msra.mxu0 %v488
  %1426 = vmatprep.subr.mxu0 %v492
  %1427 = vmatpush1.msra.mxu0 %v491
  %1428 = vmatprep.subr.mxu0 %v495
  %1429 = vmatpush1.msra.mxu0 %v494
  %1430 = vmatprep.subr.mxu0 %v498
  %1431 = vmatpush1.msra.mxu0 %v497
  %1432 = vmatprep.subr.mxu0 %v501
  %1433 = vmatpush1.msra.mxu0 %v500
  %1434 = vmatprep.subr.mxu0 %v504
  %1435 = vmatpush1.msra.mxu0 %v503
  %1436 = vmatprep.subr.mxu0 %v507
  %1437 = vmatpush1.msra.mxu0 %v506
  %1438 = vmatprep.subr.mxu0 0.0
  %1439 = vmatpush1.msra.mxu0 0.0
  %1440 = vmatprep.subr.mxu0 0.0
  %1441 = vmatpush1.msra.mxu0 0.0
  %1442 = vmatprep.subr.mxu0 0.0
  %1443 = vmatpush1.msra.mxu0 0.0
  %1444 = vmatprep.subr.mxu0 0.0
  %1445 = vmatpush1.msra.mxu0 0.0
  %1446 = vmatprep.subr.mxu0 0.0
  %1447 = vmatpush1.msra.mxu0 0.0
  %1448 = vmatprep.subr.mxu0 0.0
  %1449 = vmatpush1.msra.mxu0 0.0
  %1450 = vmatprep.subr.mxu0 0.0
  %1451 = vmatpush1.msra.mxu0 0.0
  %1452 = vmatprep.subr.mxu0 0.0
  %1453 = vmatpush1.msra.mxu0 0.0
  %1454 = vmatprep.subr.mxu0 0.0
  %1455 = vmatpush1.msra.mxu0 0.0
  %1456 = vmatprep.subr.mxu0 0.0
  %1457 = vmatpush1.msra.mxu0 0.0
  %1458 = vmatprep.subr.mxu0 0.0
  %1459 = vmatpush1.msra.mxu0 0.0
  %1460 = vmatprep.subr.mxu0 0.0
  %1461 = vmatpush1.msra.mxu0 0.0
  %1462 = vmatprep.subr.mxu0 0.0
  %1463 = vmatpush1.msra.mxu0 0.0
  %1464 = vmatprep.subr.mxu0 0.0
  %1465 = vmatpush1.msra.mxu0 0.0
  %1466 = vmatprep.subr.mxu0 0.0
  %1467 = vmatpush1.msra.mxu0 0.0
  %1468 = vmatprep.subr.mxu0 0.0
  %1469 = vmatpush1.msra.mxu0 0.0
  %1470 = vmatprep.mubr.f32.mxu0 0.0
  %1471 = vmatmul.mubr.f32.gmra.mrb[0].mxu0 %v1394
  %v1472 = vpop.f32.mrb[0].mxu0
  %v1473 = vadd.f32 0.0, %v1472
  %v1474 = vpop.f32.mrb[0].mxu0
  %v1475 = vadd.f32 0.0, %v1474
  %1476 = vdwg.mxu0
  %1477 = vmatprep.subr.mxu0 0.0
  %1478 = vmatpush1.msra.mxu0 %v463
  %1479 = vmatprep.subr.mxu0 0.0
  %1480 = vmatpush1.msra.mxu0 %v466
  %1481 = vmatprep.subr.mxu0 0.0
  %1482 = vmatpush1.msra.mxu0 %v469
  %1483 = vmatprep.subr.mxu0 0.0
  %1484 = vmatpush1.msra.mxu0 %v472
  %1485 = vmatprep.subr.mxu0 0.0
  %1486 = vmatpush1.msra.mxu0 %v475
  %1487 = vmatprep.subr.mxu0 0.0
  %1488 = vmatpush1.msra.mxu0 %v478
  %1489 = vmatprep.subr.mxu0 0.0
  %1490 = vmatpush1.msra.mxu0 %v481
  %1491 = vmatprep.subr.mxu0 0.0
  %1492 = vmatpush1.msra.mxu0 %v484
  %1493 = vmatprep.subr.mxu0 0.0
  %1494 = vmatpush1.msra.mxu0 %v487
  %1495 = vmatprep.subr.mxu0 0.0
  %1496 = vmatpush1.msra.mxu0 %v490
  %1497 = vmatprep.subr.mxu0 0.0
  %1498 = vmatpush1.msra.mxu0 %v493
  %1499 = vmatprep.subr.mxu0 0.0
  %1500 = vmatpush1.msra.mxu0 %v496
  %1501 = vmatprep.subr.mxu0 0.0
  %1502 = vmatpush1.msra.mxu0 %v499
  %1503 = vmatprep.subr.mxu0 0.0
  %1504 = vmatpush1.msra.mxu0 %v502
  %1505 = vmatprep.subr.mxu0 0.0
  %1506 = vmatpush1.msra.mxu0 %v505
  %1507 = vmatprep.subr.mxu0 0.0
  %1508 = vmatpush1.msra.mxu0 %v508
  %1509 = vmatprep.subr.mxu0 0.0
  %1510 = vmatpush1.msra.mxu0 0.0
  %1511 = vmatprep.subr.mxu0 0.0
  %1512 = vmatpush1.msra.mxu0 0.0
  %1513 = vmatprep.subr.mxu0 0.0
  %1514 = vmatpush1.msra.mxu0 0.0
  %1515 = vmatprep.subr.mxu0 0.0
  %1516 = vmatpush1.msra.mxu0 0.0
  %1517 = vmatprep.subr.mxu0 0.0
  %1518 = vmatpush1.msra.mxu0 0.0
  %1519 = vmatprep.subr.mxu0 0.0
  %1520 = vmatpush1.msra.mxu0 0.0
  %1521 = vmatprep.subr.mxu0 0.0
  %1522 = vmatpush1.msra.mxu0 0.0
  %1523 = vmatprep.subr.mxu0 0.0
  %1524 = vmatpush1.msra.mxu0 0.0
  %1525 = vmatprep.subr.mxu0 0.0
  %1526 = vmatpush1.msra.mxu0 0.0
  %1527 = vmatprep.subr.mxu0 0.0
  %1528 = vmatpush1.msra.mxu0 0.0
  %1529 = vmatprep.subr.mxu0 0.0
  %1530 = vmatpush1.msra.mxu0 0.0
  %1531 = vmatprep.subr.mxu0 0.0
  %1532 = vmatpush1.msra.mxu0 0.0
  %1533 = vmatprep.subr.mxu0 0.0
  %1534 = vmatpush1.msra.mxu0 0.0
  %1535 = vmatprep.subr.mxu0 0.0
  %1536 = vmatpush1.msra.mxu0 0.0
  %1537 = vmatprep.subr.mxu0 0.0
  %1538 = vmatpush1.msra.mxu0 0.0
  %1539 = vmatprep.subr.mxu0 0.0
  %1540 = vmatpush1.msra.mxu0 0.0
  %1541 = vmatprep.mubr.f32.mxu0 0.0
  %1542 = vmatmul.mubr.f32.gmra.mrb[0].mxu0 %v1394
  %v1543 = vpop.f32.mrb[0].mxu0
  %v1544 = vadd.f32 0.0, %v1543
  %v1545 = vpop.f32.mrb[0].mxu0
  %1546 = vdwg.mxu0
  %v1547 = vadd.f32 %v340, %v1473
  %v1548 = vxor.u32 %v1547, 2147483648
  %v1549 = vmul.f32 %v1548, 1.442695
  %v1550 = vpow.pop %v1549
  %v1551 = vadd.f32 %v1550, 1.0
  %v1552 = vrcp.pop %v1551
  %v1553 = vmul.f32 1.0, %v1552
  %v1554 = vadd.f32 %v342, %v1475
  %v1555 = vxor.u32 %v1554, 2147483648
  %v1556 = vmul.f32 %v1555, 1.442695
  %v1557 = vpow.pop %v1556
  %v1558 = vadd.f32 %v1557, 1.0
  %v1559 = vrcp.pop %v1558
  %v1560 = vmul.f32 1.0, %v1559
  %v1561 = vadd.f32 %v1544, %v671
  %v1562 = vmul.f32 %v1553, %v1561
  %v1563 = vadd.f32 %v448, %v1562
  %v1564 = vtanh.pop %v1563
  %v1565 = vsub.f32 1.0, %v1560
  %v1566 = vmul.f32 %v1565, %v1564
  %v1567 = vmul.f32 %v1560, %v1394
  %v1568 = vadd.f32 %v1566, %v1567
  %v1569 = vmul.f32 %v1568, %v685
  %1570 = vadd.xlane.f32.xlu0 %v1569
  %v1571 = vpop.xlane.xlu0 %1570
  %v1572 = vadd.f32 %v1571, %v698
  %v1574 = vlaneseq
  %v1575 = vshrl.u32 %v1574, 7
  %v1576 = vsub.s32 %v702, %v1575
  %v1577 = vrot.slane %v1572, %v1576
  %1579 = vst.msk [vmem:[%s9 + $0x5] sm:$0x1] %vm708, %v1577
  %1580 = vmatprep.subr.mxu0 %v462
  %1581 = vmatpush1.msra.mxu0 %v461
  %1582 = vmatprep.subr.mxu0 %v465
  %1583 = vmatpush1.msra.mxu0 %v464
  %1584 = vmatprep.subr.mxu0 %v468
  %1585 = vmatpush1.msra.mxu0 %v467
  %1586 = vmatprep.subr.mxu0 %v471
  %1587 = vmatpush1.msra.mxu0 %v470
  %1588 = vmatprep.subr.mxu0 %v474
  %1589 = vmatpush1.msra.mxu0 %v473
  %1590 = vmatprep.subr.mxu0 %v477
  %1591 = vmatpush1.msra.mxu0 %v476
  %1592 = vmatprep.subr.mxu0 %v480
  %1593 = vmatpush1.msra.mxu0 %v479
  %1594 = vmatprep.subr.mxu0 %v483
  %1595 = vmatpush1.msra.mxu0 %v482
  %1596 = vmatprep.subr.mxu0 %v486
  %1597 = vmatpush1.msra.mxu0 %v485
  %1598 = vmatprep.subr.mxu0 %v489
  %1599 = vmatpush1.msra.mxu0 %v488
  %1600 = vmatprep.subr.mxu0 %v492
  %1601 = vmatpush1.msra.mxu0 %v491
  %1602 = vmatprep.subr.mxu0 %v495
  %1603 = vmatpush1.msra.mxu0 %v494
  %1604 = vmatprep.subr.mxu0 %v498
  %1605 = vmatpush1.msra.mxu0 %v497
  %1606 = vmatprep.subr.mxu0 %v501
  %1607 = vmatpush1.msra.mxu0 %v500
  %1608 = vmatprep.subr.mxu0 %v504
  %1609 = vmatpush1.msra.mxu0 %v503
  %1610 = vmatprep.subr.mxu0 %v507
  %1611 = vmatpush1.msra.mxu0 %v506
  %1612 = vmatprep.subr.mxu0 0.0
  %1613 = vmatpush1.msra.mxu0 0.0
  %1614 = vmatprep.subr.mxu0 0.0
  %1615 = vmatpush1.msra.mxu0 0.0
  %1616 = vmatprep.subr.mxu0 0.0
  %1617 = vmatpush1.msra.mxu0 0.0
  %1618 = vmatprep.subr.mxu0 0.0
  %1619 = vmatpush1.msra.mxu0 0.0
  %1620 = vmatprep.subr.mxu0 0.0
  %1621 = vmatpush1.msra.mxu0 0.0
  %1622 = vmatprep.subr.mxu0 0.0
  %1623 = vmatpush1.msra.mxu0 0.0
  %1624 = vmatprep.subr.mxu0 0.0
  %1625 = vmatpush1.msra.mxu0 0.0
  %1626 = vmatprep.subr.mxu0 0.0
  %1627 = vmatpush1.msra.mxu0 0.0
  %1628 = vmatprep.subr.mxu0 0.0
  %1629 = vmatpush1.msra.mxu0 0.0
  %1630 = vmatprep.subr.mxu0 0.0
  %1631 = vmatpush1.msra.mxu0 0.0
  %1632 = vmatprep.subr.mxu0 0.0
  %1633 = vmatpush1.msra.mxu0 0.0
  %1634 = vmatprep.subr.mxu0 0.0
  %1635 = vmatpush1.msra.mxu0 0.0
  %1636 = vmatprep.subr.mxu0 0.0
  %1637 = vmatpush1.msra.mxu0 0.0
  %1638 = vmatprep.subr.mxu0 0.0
  %1639 = vmatpush1.msra.mxu0 0.0
  %1640 = vmatprep.subr.mxu0 0.0
  %1641 = vmatpush1.msra.mxu0 0.0
  %1642 = vmatprep.subr.mxu0 0.0
  %1643 = vmatpush1.msra.mxu0 0.0
  %1644 = vmatprep.mubr.f32.mxu0 0.0
  %1645 = vmatmul.mubr.f32.gmra.mrb[0].mxu0 %v1568
  %v1646 = vpop.f32.mrb[0].mxu0
  %v1647 = vadd.f32 0.0, %v1646
  %v1648 = vpop.f32.mrb[0].mxu0
  %v1649 = vadd.f32 0.0, %v1648
  %1650 = vdwg.mxu0
  %1651 = vmatprep.subr.mxu0 0.0
  %1652 = vmatpush1.msra.mxu0 %v463
  %1653 = vmatprep.subr.mxu0 0.0
  %1654 = vmatpush1.msra.mxu0 %v466
  %1655 = vmatprep.subr.mxu0 0.0
  %1656 = vmatpush1.msra.mxu0 %v469
  %1657 = vmatprep.subr.mxu0 0.0
  %1658 = vmatpush1.msra.mxu0 %v472
  %1659 = vmatprep.subr.mxu0 0.0
  %1660 = vmatpush1.msra.mxu0 %v475
  %1661 = vmatprep.subr.mxu0 0.0
  %1662 = vmatpush1.msra.mxu0 %v478
  %1663 = vmatprep.subr.mxu0 0.0
  %1664 = vmatpush1.msra.mxu0 %v481
  %1665 = vmatprep.subr.mxu0 0.0
  %1666 = vmatpush1.msra.mxu0 %v484
  %1667 = vmatprep.subr.mxu0 0.0
  %1668 = vmatpush1.msra.mxu0 %v487
  %1669 = vmatprep.subr.mxu0 0.0
  %1670 = vmatpush1.msra.mxu0 %v490
  %1671 = vmatprep.subr.mxu0 0.0
  %1672 = vmatpush1.msra.mxu0 %v493
  %1673 = vmatprep.subr.mxu0 0.0
  %1674 = vmatpush1.msra.mxu0 %v496
  %1675 = vmatprep.subr.mxu0 0.0
  %1676 = vmatpush1.msra.mxu0 %v499
  %1677 = vmatprep.subr.mxu0 0.0
  %1678 = vmatpush1.msra.mxu0 %v502
  %1679 = vmatprep.subr.mxu0 0.0
  %1680 = vmatpush1.msra.mxu0 %v505
  %1681 = vmatprep.subr.mxu0 0.0
  %1682 = vmatpush1.msra.mxu0 %v508
  %1683 = vmatprep.subr.mxu0 0.0
  %1684 = vmatpush1.msra.mxu0 0.0
  %1685 = vmatprep.subr.mxu0 0.0
  %1686 = vmatpush1.msra.mxu0 0.0
  %1687 = vmatprep.subr.mxu0 0.0
  %1688 = vmatpush1.msra.mxu0 0.0
  %1689 = vmatprep.subr.mxu0 0.0
  %1690 = vmatpush1.msra.mxu0 0.0
  %1691 = vmatprep.subr.mxu0 0.0
  %1692 = vmatpush1.msra.mxu0 0.0
  %1693 = vmatprep.subr.mxu0 0.0
  %1694 = vmatpush1.msra.mxu0 0.0
  %1695 = vmatprep.subr.mxu0 0.0
  %1696 = vmatpush1.msra.mxu0 0.0
  %1697 = vmatprep.subr.mxu0 0.0
  %1698 = vmatpush1.msra.mxu0 0.0
  %1699 = vmatprep.subr.mxu0 0.0
  %1700 = vmatpush1.msra.mxu0 0.0
  %1701 = vmatprep.subr.mxu0 0.0
  %1702 = vmatpush1.msra.mxu0 0.0
  %1703 = vmatprep.subr.mxu0 0.0
  %1704 = vmatpush1.msra.mxu0 0.0
  %1705 = vmatprep.subr.mxu0 0.0
  %1706 = vmatpush1.msra.mxu0 0.0
  %1707 = vmatprep.subr.mxu0 0.0
  %1708 = vmatpush1.msra.mxu0 0.0
  %1709 = vmatprep.subr.mxu0 0.0
  %1710 = vmatpush1.msra.mxu0 0.0
  %1711 = vmatprep.subr.mxu0 0.0
  %1712 = vmatpush1.msra.mxu0 0.0
  %1713 = vmatprep.subr.mxu0 0.0
  %1714 = vmatpush1.msra.mxu0 0.0
  %1715 = vmatprep.mubr.f32.mxu0 0.0
  %1716 = vmatmul.mubr.f32.gmra.mrb[0].mxu0 %v1568
  %v1717 = vpop.f32.mrb[0].mxu0
  %v1718 = vadd.f32 0.0, %v1717
  %v1719 = vpop.f32.mrb[0].mxu0
  %1720 = vdwg.mxu0
  %v1721 = vadd.f32 %v346, %v1647
  %v1722 = vxor.u32 %v1721, 2147483648
  %v1723 = vmul.f32 %v1722, 1.442695
  %v1724 = vpow.pop %v1723
  %v1725 = vadd.f32 %v1724, 1.0
  %v1726 = vrcp.pop %v1725
  %v1727 = vmul.f32 1.0, %v1726
  %v1728 = vadd.f32 %v348, %v1649
  %v1729 = vxor.u32 %v1728, 2147483648
  %v1730 = vmul.f32 %v1729, 1.442695
  %v1731 = vpow.pop %v1730
  %v1732 = vadd.f32 %v1731, 1.0
  %v1733 = vrcp.pop %v1732
  %v1734 = vmul.f32 1.0, %v1733
  %v1735 = vadd.f32 %v1718, %v671
  %v1736 = vmul.f32 %v1727, %v1735
  %v1737 = vadd.f32 %v453, %v1736
  %v1738 = vtanh.pop %v1737
  %v1739 = vsub.f32 1.0, %v1734
  %v1740 = vmul.f32 %v1739, %v1738
  %v1741 = vmul.f32 %v1734, %v1568
  %v1742 = vadd.f32 %v1740, %v1741
  %v1743 = vmul.f32 %v1742, %v685
  %1744 = vadd.xlane.f32.xlu0 %v1743
  %v1745 = vpop.xlane.xlu0 %1744
  %v1746 = vadd.f32 %v1745, %v698
  %v1748 = vlaneseq
  %v1749 = vshrl.u32 %v1748, 7
  %v1750 = vsub.s32 %v702, %v1749
  %v1751 = vrot.slane %v1746, %v1750
  %1753 = vst.msk [vmem:[%s9 + $0x6] sm:$0x1] %vm708, %v1751
  %1754 = vmatprep.subr.mxu0 %v462
  %1755 = vmatpush1.msra.mxu0 %v461
  %1756 = vmatprep.subr.mxu0 %v465
  %1757 = vmatpush1.msra.mxu0 %v464
  %1758 = vmatprep.subr.mxu0 %v468
  %1759 = vmatpush1.msra.mxu0 %v467
  %1760 = vmatprep.subr.mxu0 %v471
  %1761 = vmatpush1.msra.mxu0 %v470
  %1762 = vmatprep.subr.mxu0 %v474
  %1763 = vmatpush1.msra.mxu0 %v473
  %1764 = vmatprep.subr.mxu0 %v477
  %1765 = vmatpush1.msra.mxu0 %v476
  %1766 = vmatprep.subr.mxu0 %v480
  %1767 = vmatpush1.msra.mxu0 %v479
  %1768 = vmatprep.subr.mxu0 %v483
  %1769 = vmatpush1.msra.mxu0 %v482
  %1770 = vmatprep.subr.mxu0 %v486
  %1771 = vmatpush1.msra.mxu0 %v485
  %1772 = vmatprep.subr.mxu0 %v489
  %1773 = vmatpush1.msra.mxu0 %v488
  %1774 = vmatprep.subr.mxu0 %v492
  %1775 = vmatpush1.msra.mxu0 %v491
  %1776 = vmatprep.subr.mxu0 %v495
  %1777 = vmatpush1.msra.mxu0 %v494
  %1778 = vmatprep.subr.mxu0 %v498
  %1779 = vmatpush1.msra.mxu0 %v497
  %1780 = vmatprep.subr.mxu0 %v501
  %1781 = vmatpush1.msra.mxu0 %v500
  %1782 = vmatprep.subr.mxu0 %v504
  %1783 = vmatpush1.msra.mxu0 %v503
  %1784 = vmatprep.subr.mxu0 %v507
  %1785 = vmatpush1.msra.mxu0 %v506
  %1786 = vmatprep.subr.mxu0 0.0
  %1787 = vmatpush1.msra.mxu0 0.0
  %1788 = vmatprep.subr.mxu0 0.0
  %1789 = vmatpush1.msra.mxu0 0.0
  %1790 = vmatprep.subr.mxu0 0.0
  %1791 = vmatpush1.msra.mxu0 0.0
  %1792 = vmatprep.subr.mxu0 0.0
  %1793 = vmatpush1.msra.mxu0 0.0
  %1794 = vmatprep.subr.mxu0 0.0
  %1795 = vmatpush1.msra.mxu0 0.0
  %1796 = vmatprep.subr.mxu0 0.0
  %1797 = vmatpush1.msra.mxu0 0.0
  %1798 = vmatprep.subr.mxu0 0.0
  %1799 = vmatpush1.msra.mxu0 0.0
  %1800 = vmatprep.subr.mxu0 0.0
  %1801 = vmatpush1.msra.mxu0 0.0
  %1802 = vmatprep.subr.mxu0 0.0
  %1803 = vmatpush1.msra.mxu0 0.0
  %1804 = vmatprep.subr.mxu0 0.0
  %1805 = vmatpush1.msra.mxu0 0.0
  %1806 = vmatprep.subr.mxu0 0.0
  %1807 = vmatpush1.msra.mxu0 0.0
  %1808 = vmatprep.subr.mxu0 0.0
  %1809 = vmatpush1.msra.mxu0 0.0
  %1810 = vmatprep.subr.mxu0 0.0
  %1811 = vmatpush1.msra.mxu0 0.0
  %1812 = vmatprep.subr.mxu0 0.0
  %1813 = vmatpush1.msra.mxu0 0.0
  %1814 = vmatprep.subr.mxu0 0.0
  %1815 = vmatpush1.msra.mxu0 0.0
  %1816 = vmatprep.subr.mxu0 0.0
  %1817 = vmatpush1.msra.mxu0 0.0
  %1818 = vmatprep.mubr.f32.mxu0 0.0
  %1819 = vmatmul.mubr.f32.gmra.mrb[0].mxu0 %v1742
  %v1820 = vpop.f32.mrb[0].mxu0
  %v1821 = vadd.f32 0.0, %v1820
  %v1822 = vpop.f32.mrb[0].mxu0
  %v1823 = vadd.f32 0.0, %v1822
  %1824 = vdwg.mxu0
  %1825 = vmatprep.subr.mxu0 0.0
  %1826 = vmatpush1.msra.mxu0 %v463
  %1827 = vmatprep.subr.mxu0 0.0
  %1828 = vmatpush1.msra.mxu0 %v466
  %1829 = vmatprep.subr.mxu0 0.0
  %1830 = vmatpush1.msra.mxu0 %v469
  %1831 = vmatprep.subr.mxu0 0.0
  %1832 = vmatpush1.msra.mxu0 %v472
  %1833 = vmatprep.subr.mxu0 0.0
  %1834 = vmatpush1.msra.mxu0 %v475
  %1835 = vmatprep.subr.mxu0 0.0
  %1836 = vmatpush1.msra.mxu0 %v478
  %1837 = vmatprep.subr.mxu0 0.0
  %1838 = vmatpush1.msra.mxu0 %v481
  %1839 = vmatprep.subr.mxu0 0.0
  %1840 = vmatpush1.msra.mxu0 %v484
  %1841 = vmatprep.subr.mxu0 0.0
  %1842 = vmatpush1.msra.mxu0 %v487
  %1843 = vmatprep.subr.mxu0 0.0
  %1844 = vmatpush1.msra.mxu0 %v490
  %1845 = vmatprep.subr.mxu0 0.0
  %1846 = vmatpush1.msra.mxu0 %v493
  %1847 = vmatprep.subr.mxu0 0.0
  %1848 = vmatpush1.msra.mxu0 %v496
  %1849 = vmatprep.subr.mxu0 0.0
  %1850 = vmatpush1.msra.mxu0 %v499
  %1851 = vmatprep.subr.mxu0 0.0
  %1852 = vmatpush1.msra.mxu0 %v502
  %1853 = vmatprep.subr.mxu0 0.0
  %1854 = vmatpush1.msra.mxu0 %v505
  %1855 = vmatprep.subr.mxu0 0.0
  %1856 = vmatpush1.msra.mxu0 %v508
  %1857 = vmatprep.subr.mxu0 0.0
  %1858 = vmatpush1.msra.mxu0 0.0
  %1859 = vmatprep.subr.mxu0 0.0
  %1860 = vmatpush1.msra.mxu0 0.0
  %1861 = vmatprep.subr.mxu0 0.0
  %1862 = vmatpush1.msra.mxu0 0.0
  %1863 = vmatprep.subr.mxu0 0.0
  %1864 = vmatpush1.msra.mxu0 0.0
  %1865 = vmatprep.subr.mxu0 0.0
  %1866 = vmatpush1.msra.mxu0 0.0
  %1867 = vmatprep.subr.mxu0 0.0
  %1868 = vmatpush1.msra.mxu0 0.0
  %1869 = vmatprep.subr.mxu0 0.0
  %1870 = vmatpush1.msra.mxu0 0.0
  %1871 = vmatprep.subr.mxu0 0.0
  %1872 = vmatpush1.msra.mxu0 0.0
  %1873 = vmatprep.subr.mxu0 0.0
  %1874 = vmatpush1.msra.mxu0 0.0
  %1875 = vmatprep.subr.mxu0 0.0
  %1876 = vmatpush1.msra.mxu0 0.0
  %1877 = vmatprep.subr.mxu0 0.0
  %1878 = vmatpush1.msra.mxu0 0.0
  %1879 = vmatprep.subr.mxu0 0.0
  %1880 = vmatpush1.msra.mxu0 0.0
  %1881 = vmatprep.subr.mxu0 0.0
  %1882 = vmatpush1.msra.mxu0 0.0
  %1883 = vmatprep.subr.mxu0 0.0
  %1884 = vmatpush1.msra.mxu0 0.0
  %1885 = vmatprep.subr.mxu0 0.0
  %1886 = vmatpush1.msra.mxu0 0.0
  %1887 = vmatprep.subr.mxu0 0.0
  %1888 = vmatpush1.msra.mxu0 0.0
  %1889 = vmatprep.mubr.f32.mxu0 0.0
  %1890 = vmatmul.mubr.f32.gmra.mrb[0].mxu0 %v1742
  %v1891 = vpop.f32.mrb[0].mxu0
  %v1892 = vadd.f32 0.0, %v1891
  %v1893 = vpop.f32.mrb[0].mxu0
  %1894 = vdwg.mxu0
  %v1895 = vadd.f32 %v352, %v1821
  %v1896 = vxor.u32 %v1895, 2147483648
  %v1897 = vmul.f32 %v1896, 1.442695
  %v1898 = vpow.pop %v1897
  %v1899 = vadd.f32 %v1898, 1.0
  %v1900 = vrcp.pop %v1899
  %v1901 = vmul.f32 1.0, %v1900
  %v1902 = vadd.f32 %v354, %v1823
  %v1903 = vxor.u32 %v1902, 2147483648
  %v1904 = vmul.f32 %v1903, 1.442695
  %v1905 = vpow.pop %v1904
  %v1906 = vadd.f32 %v1905, 1.0
  %v1907 = vrcp.pop %v1906
  %v1908 = vmul.f32 1.0, %v1907
  %v1909 = vadd.f32 %v1892, %v671
  %v1910 = vmul.f32 %v1901, %v1909
  %v1911 = vadd.f32 %v458, %v1910
  %v1912 = vtanh.pop %v1911
  %v1913 = vsub.f32 1.0, %v1908
  %v1914 = vmul.f32 %v1913, %v1912
  %v1915 = vmul.f32 %v1908, %v1742
  %v1916 = vadd.f32 %v1914, %v1915
  %v1917 = vmul.f32 %v1916, %v685
  %1918 = vadd.xlane.f32.xlu0 %v1917
  %v1919 = vpop.xlane.xlu0 %1918
  %v1920 = vadd.f32 %v1919, %v698
  %v1922 = vlaneseq
  %v1923 = vshrl.u32 %v1922, 7
  %v1924 = vsub.s32 %v702, %v1923
  %v1925 = vrot.slane %v1920, %v1924
  %1927 = vst.msk [vmem:[%s9 + $0x7] sm:$0x1] %vm708, %v1925
  // Predicated region
  $region38: #{critic_rnn_forward.1} parent=0 // pred_check
    _
  $region39: #{critic_rnn_forward.1} parent=0 // pred_check_branch
    %1929 = sbr.rel (0) target = $region41
  $region40: #{critic_rnn_forward.1} parent=0 // pred_region
    _
  $region41: #{critic_rnn_forward.1} parent=0 // pred_fallthru
    _
  // Predicated region
  $region42: #{critic_rnn_forward.1} parent=0 // pred_check
    _
  $region43: #{critic_rnn_forward.1} parent=0 // pred_check_branch
    %1931 = sbr.rel (0) target = $region45
  $region44: #{critic_rnn_forward.1} parent=0 // pred_region
    _
  $region45: #{critic_rnn_forward.1} parent=0 // pred_fallthru
    _

</llo_original>
